<compile_context>
chip_gen: v5e
topology: v5e:2x2
jax: 0.10.0
libtpu: 0.0.40
codegen_flags: <defaults>
</compile_context>

<pallas_src>
import math
import functools

import jax
import jax.numpy as jnp
from jax import lax
from jax.experimental import pallas as pl
from jax.experimental.pallas import tpu as pltpu

_MIB = 1024 * 1024


# ---------------------------------------------------------------------------
# Kernel
# ---------------------------------------------------------------------------
def _mha_kernel(xq_ref, xk_ref, xv_ref,
                wq_ref, bq_ref, wk_ref, bk_ref, wv_ref, bv_ref,
                wo_ref, bo_ref,
                out_ref,
                kproj_ref, vproj_ref, ctx_ref,
                *, num_heads, head_dim, mxu_dtype, approx_recip):
    """One (batch, q_tile) grid step of multi-head attention."""

    # ---- K/V projections: once per batch, cached in VMEM scratch. --------
    # The q-tile axis is marked 'arbitrary', so every q tile of a batch runs
    # on the same core after the qi == 0 step that fills the cache.
    @pl.when(pl.program_id(1) == 0)
    def _():
        xk = xk_ref[0]                                     # (Sk, E)
        xv = xv_ref[0]
        kproj_ref[...] = (jnp.dot(xk, wk_ref[...],
                                  preferred_element_type=jnp.float32)
                          + bk_ref[0]).astype(mxu_dtype)
        vproj_ref[...] = (jnp.dot(xv, wv_ref[...],
                                  preferred_element_type=jnp.float32)
                          + bv_ref[0]).astype(mxu_dtype)

    # ---- Q projection for this q tile (1/sqrt(Dh) folded into wq/bq). ----
    xq = xq_ref[0]                                         # (tq, E)
    q_all = jnp.dot(xq, wq_ref[...],
                    preferred_element_type=jnp.float32) + bq_ref[0]   # f32

    k_all = kproj_ref[...]                                 # (Sk, E) mxu_dtype
    v_all = vproj_ref[...]

    contract_last = (((1,), (1,)), ((), ()))               # q @ k^T, no k.T copy

    # Static unroll over heads (num_heads is small).  Each head writes its
    # context slice straight into the persistent (tq, E) scratch -- no concat.
    # NOTE: the [:, h*Dh:(h+1)*Dh] lane slices are misaligned when Dh % 128
    # != 0 and cost an XLU lane shift per head; unavoidable for this layout.
    # TODO(synk): switch to lax.fori_loop for very large num_heads so the
    # (tq, Sk) temporaries provably do not stay live across heads.
    for h in range(num_heads):
        sl = slice(h * head_dim, (h + 1) * head_dim)
        q_h = q_all[:, sl].astype(mxu_dtype)               # (tq, Dh)
        k_h = k_all[:, sl]                                  # (Sk, Dh)
        v_h = v_all[:, sl]                                  # (Sk, Dh)

        scores = lax.dot_general(q_h, k_h, contract_last,
                                 preferred_element_type=jnp.float32)  # (tq, Sk)

        # Row softmax in f32 with deferred normalization.
        m = jnp.max(scores, axis=-1, keepdims=True)
        e = jnp.exp(scores - m)                             # (tq, Sk)
        denom = jnp.sum(e, axis=-1, keepdims=True)          # (tq, 1)

        ctx_h = jnp.dot(e.astype(mxu_dtype), v_h,
                        preferred_element_type=jnp.float32)  # (tq, Dh)
        if approx_recip:
            ctx_h = ctx_h * pl.reciprocal(denom, approx=True)   # EUP slot
        else:
            ctx_h = ctx_h / denom
        ctx_ref[:, sl] = ctx_h

    # ---- Output projection: one full-width (tq, E) @ (E, E). -------------
    out = jnp.dot(ctx_ref[...].astype(mxu_dtype), wo_ref[...],
                  preferred_element_type=jnp.float32) + bo_ref[0]
    out_ref[0] = out.astype(out_ref.dtype)


# ---------------------------------------------------------------------------
# VMEM budgeting / tile selection
# ---------------------------------------------------------------------------
def _vmem_budget_bytes():
    """Per-generation VMEM budget: physical capacity minus headroom."""
    try:
        cap = int(pltpu.get_tpu_info().vmem_capacity_bytes)
    except Exception:          # pragma: no cover - conservative fallback
        cap = 64 * _MIB        # v7x physical size; safe floor everywhere
    return min(cap - 16 * _MIB, cap * 7 // 8)


def _vmem_needed(tq, sk, e, in_bytes, out_bytes):
    """Rough per-step VMEM footprint (pipelined blocks + scratch + temps)."""
    blocks = (2 * tq * e * in_bytes            # xq block (double-buffered)
              + 2 * 2 * sk * e * in_bytes      # xk / xv blocks (double-buffered)
              + 4 * e * e * in_bytes           # fused weights (single-buffered)
              + 4 * e * 4                      # f32 biases
              + 2 * tq * e * out_bytes)        # output block (double-buffered)
    scratch = 2 * sk * e * in_bytes + tq * e * 4       # kproj/vproj + ctx
    temps = (2 * tq * e * 4                    # q_all + cast/out temporaries
             + 2 * tq * sk * 4                 # scores + exp
             + 2 * sk * e * 4)                 # projection f32 temporaries
    return blocks + scratch + temps


def _pick_q_tile(sq, sk, e, in_bytes, out_bytes, budget):
    sq8 = max(8, -(-sq // 8) * 8)                        # Sq rounded up to 8
    candidates = [t for t in (1024, 512, 256, 128, 64, 32, 16, 8) if t <= sq8]
    if not candidates:
        candidates = [sq8]
    for t in candidates:                                 # largest tile that fits
        if _vmem_needed(t, sk, e, in_bytes, out_bytes) <= budget:
            return t
    # TODO(synk): add Sk tiling / online softmax for key sequences so long
    # that even the smallest q tile does not fit the VMEM budget.
    return candidates[-1]


# ---------------------------------------------------------------------------
# Wrapper
# ---------------------------------------------------------------------------
def multi_head_attention(query, key, value, params, *, num_heads,
                         mxu_dtype=jnp.bfloat16, approx_reciprocal=None,
                         q_tile=None):
    """query/key/value: [B, S, E].  Returns [B, S_q, E] in the input dtype."""
    B, Sq, E = query.shape
    _, Sk, _ = key.shape
    head_dim = E // num_heads
    out_dtype = query.dtype
    if approx_reciprocal is None:
        approx_reciprocal = (jnp.dtype(mxu_dtype) != jnp.dtype(jnp.float32))

    wq, bq, wk, bk, wv, bv, wo, bo = params
    # wq/wk/wv: (H, E, Dh); bq/bk/bv: (H, Dh); wo: (E, E); bo: (E,)

    # Fuse per-head projections into single (E, E) weights (head h -> columns
    # [h*Dh:(h+1)*Dh]) and fold the 1/sqrt(Dh) attention scale into Wq/bq.
    scale = 1.0 / math.sqrt(head_dim)
    wq_f = (wq.transpose(1, 0, 2).reshape(E, E) * scale).astype(mxu_dtype)
    wk_f = wk.transpose(1, 0, 2).reshape(E, E).astype(mxu_dtype)
    wv_f = wv.transpose(1, 0, 2).reshape(E, E).astype(mxu_dtype)
    wo_f = wo.astype(mxu_dtype)
    bq_f = (bq.reshape(1, E) * scale).astype(jnp.float32)
    bk_f = bk.reshape(1, E).astype(jnp.float32)
    bv_f = bv.reshape(1, E).astype(jnp.float32)
    bo_f = bo.reshape(1, E).astype(jnp.float32)

    # Cast activations once in the wrapper: halves HBM->VMEM DMA and blocks.
    xq = query.astype(mxu_dtype)
    xk = key.astype(mxu_dtype)
    xv = value.astype(mxu_dtype)

    in_bytes = jnp.dtype(mxu_dtype).itemsize
    out_bytes = jnp.dtype(out_dtype).itemsize
    budget = _vmem_budget_bytes()
    if q_tile is None:
        q_tile = _pick_q_tile(Sq, Sk, E, in_bytes, out_bytes, budget)

    # Pad Sq to a multiple of q_tile (padded query rows are dropped afterwards).
    sq_pad = -(-Sq // q_tile) * q_tile
    if sq_pad != Sq:
        xq = jnp.pad(xq, ((0, 0), (0, sq_pad - Sq), (0, 0)))

    grid = (B, sq_pad // q_tile)
    needed = _vmem_needed(q_tile, Sk, E, in_bytes, out_bytes)
    vmem_limit = int(min(budget, max(needed * 3 // 2, 32 * _MIB)))

    kernel = functools.partial(_mha_kernel, num_heads=num_heads,
                               head_dim=head_dim, mxu_dtype=mxu_dtype,
                               approx_recip=approx_reciprocal)

    def _call(weight_pipeline_mode):
        wkw = ({} if weight_pipeline_mode is None
               else dict(pipeline_mode=weight_pipeline_mode))
        xq_spec = pl.BlockSpec((1, q_tile, E), lambda b, qi: (b, qi, 0))
        xkv_spec = pl.BlockSpec((1, Sk, E), lambda b, qi: (b, 0, 0))
        w_spec = pl.BlockSpec((E, E), lambda b, qi: (0, 0), **wkw)
        b_spec = pl.BlockSpec((1, E), lambda b, qi: (0, 0), **wkw)
        out_spec = pl.BlockSpec((1, q_tile, E), lambda b, qi: (b, qi, 0))

        return pl.pallas_call(
            kernel,
            out_shape=jax.ShapeDtypeStruct((B, sq_pad, E), out_dtype),
            grid_spec=pltpu.PrefetchScalarGridSpec(
                num_scalar_prefetch=0,
                grid=grid,
                in_specs=[
                    xq_spec, xkv_spec, xkv_spec,
                    w_spec, b_spec,
                    w_spec, b_spec,
                    w_spec, b_spec,
                    w_spec, b_spec,
                ],
                out_specs=out_spec,
                scratch_shapes=[
                    pltpu.VMEM((Sk, E), mxu_dtype),        # cached K projection
                    pltpu.VMEM((Sk, E), mxu_dtype),        # cached V projection
                    pltpu.VMEM((q_tile, E), jnp.float32),  # per-tile context
                ]),
            compiler_params=pltpu.CompilerParams(
                # batch axis parallel (keeps both v7x TensorCores busy when
                # B >= 2); q axis 'arbitrary' so the per-batch K/V projection
                # cache in scratch stays valid.
                dimension_semantics=("parallel", "arbitrary"),
                vmem_limit_bytes=vmem_limit),
        )(xq, xk, xv,
          wq_f, bq_f, wk_f, bk_f, wv_f, bv_f, wo_f, bo_f)

    try:
        # Grid-invariant weight/bias blocks only need a single VMEM buffer.
        out = _call(pl.Buffered(buffer_count=1))
    except Exception:
        # TODO(synk): pipeline_mode=pl.Buffered(1) not accepted by this jax
        # build; fall back to default double-buffered weight blocks.
        out = _call(None)

    if sq_pad != Sq:
        out = out[:, :Sq, :]
    return out


# ---------------------------------------------------------------------------
# Parameter init + pure-JAX reference (mirrors the PyTorch forward)
# ---------------------------------------------------------------------------
def init_params(key, embed_dim, num_heads):
    """Deterministic init mirroring nn.Linear shapes (uniform +-1/sqrt(fan_in))."""
    head_dim = embed_dim // num_heads
    ks = jax.random.split(key, 8)

    def unif(k, shape, fan_in):
        bound = 1.0 / math.sqrt(fan_in)
        return jax.random.uniform(k, shape, jnp.float32, -bound, bound)

    wq = unif(ks[0], (num_heads, embed_dim, head_dim), embed_dim)
    bq = unif(ks[1], (num_heads, head_dim), embed_dim)
    wk = unif(ks[2], (num_heads, embed_dim, head_dim), embed_dim)
    bk = unif(ks[3], (num_heads, head_dim), embed_dim)
    wv = unif(ks[4], (num_heads, embed_dim, head_dim), embed_dim)
    bv = unif(ks[5], (num_heads, head_dim), embed_dim)
    wo = unif(ks[6], (embed_dim, embed_dim), embed_dim)
    bo = unif(ks[7], (embed_dim,), embed_dim)
    return (wq, bq, wk, bk, wv, bv, wo, bo)


def reference_mha(query, key, value, params, *, num_heads):
    """Pure-JAX f32 reference reproducing the PyTorch forward semantics."""
    wq, bq, wk, bk, wv, bv, wo, bo = params
    E = query.shape[-1]
    head_dim = E // num_heads
    head_outs = []
    for h in range(num_heads):
        q = query @ wq[h] + bq[h]
        k = key @ wk[h] + bk[h]
        v = value @ wv[h] + bv[h]
        s = jnp.einsum("bqd,bkd->bqk", q, k) / math.sqrt(head_dim)
        w = jax.nn.softmax(s, axis=-1)
        head_outs.append(jnp.einsum("bqk,bkd->bqd", w, v))
    x = jnp.concatenate(head_outs, axis=-1)
    return x @ wo + bo


if __name__ == "__main__":
    B, S, E, H = 2, 8, 32, 4

    key = jax.random.PRNGKey(0)
    k_q, k_k, k_v, k_p, k_q2 = jax.random.split(key, 5)
    query = jax.random.normal(k_q, (B, S, E), jnp.float32)
    key_in = jax.random.normal(k_k, (B, S, E), jnp.float32)
    value = jax.random.normal(k_v, (B, S, E), jnp.float32)

    params = init_params(k_p, E, H)
    ref = reference_mha(query, key_in, value, params, num_heads=H)

    # f32 accuracy mode (exact softmax division).
    out_f32 = multi_head_attention(query, key_in, value, params, num_heads=H,
                                   mxu_dtype=jnp.float32)
    out_f32 = jax.block_until_ready(out_f32)
    assert out_f32.shape == (B, S, E)
    assert jnp.allclose(out_f32, ref, atol=2e-3, rtol=2e-3), "f32 mode mismatch"

    # Default bf16-MXU fast mode (loosened tolerance for bf16 operands).
    out_bf16 = multi_head_attention(query, key_in, value, params, num_heads=H)
    out_bf16 = jax.block_until_ready(out_bf16)
    assert out_bf16.shape == (B, S, E)
    assert jnp.allclose(out_bf16, ref, atol=5e-2, rtol=5e-2), "bf16 mode mismatch"

    # Multi-q-tile + padded-Sq path: exercises the per-batch K/V projection
    # cache (pl.when at qi == 0) and the Sq padding/unpadding logic.
    Sq2 = 24
    query2 = jax.random.normal(k_q2, (B, Sq2, E), jnp.float32)
    ref2 = reference_mha(query2, key_in, value, params, num_heads=H)
    out2 = multi_head_attention(query2, key_in, value, params, num_heads=H,
                                q_tile=16)
    out2 = jax.block_until_ready(out2)
    assert out2.shape == (B, Sq2, E)
    assert jnp.allclose(out2, ref2, atol=5e-2, rtol=5e-2), "padded/tiled mismatch"

    print("KERNEL_OK")
</pallas_src>

<mosaic_0001>
module attributes {stable_mosaic.version = 11 : i64} {
  func.func @_mha_kernel(%arg0: i32, %arg1: i32, %arg2: memref<1x8x32xf32, #tpu.memory_space<vmem>>, %arg3: memref<1x8x32xf32, #tpu.memory_space<vmem>>, %arg4: memref<1x8x32xf32, #tpu.memory_space<vmem>>, %arg5: memref<32x32xf32, #tpu.memory_space<vmem>>, %arg6: memref<1x32xf32, #tpu.memory_space<vmem>>, %arg7: memref<32x32xf32, #tpu.memory_space<vmem>>, %arg8: memref<1x32xf32, #tpu.memory_space<vmem>>, %arg9: memref<32x32xf32, #tpu.memory_space<vmem>>, %arg10: memref<1x32xf32, #tpu.memory_space<vmem>>, %arg11: memref<32x32xf32, #tpu.memory_space<vmem>>, %arg12: memref<1x32xf32, #tpu.memory_space<vmem>>, %arg13: memref<1x8x32xf32, #tpu.memory_space<vmem>>, %arg14: memref<8x32xf32, #tpu.memory_space<vmem>>, %arg15: memref<8x32xf32, #tpu.memory_space<vmem>>, %arg16: memref<8x32xf32, #tpu.memory_space<vmem>>) attributes {dimension_semantics = [#tpu.dimension_semantics<parallel>, #tpu.dimension_semantics<arbitrary>], iteration_bounds = array<i64: 2, 1>, scalar_prefetch = 0 : i64, scratch_operands = 3 : i64, tpu.core_type = #tpu.core_type<tc>, window_params = [{transform_indices = @transform_0, window_bounds = array<i64: 1, 8, 32>}, {transform_indices = @transform_1, window_bounds = array<i64: 1, 8, 32>}, {transform_indices = @transform_2, window_bounds = array<i64: 1, 8, 32>}, {pipeline_mode = #tpu.pipeline_mode<synchronous>, transform_indices = @transform_3, window_bounds = array<i64: 32, 32>}, {pipeline_mode = #tpu.pipeline_mode<synchronous>, transform_indices = @transform_4, window_bounds = array<i64: 1, 32>}, {pipeline_mode = #tpu.pipeline_mode<synchronous>, transform_indices = @transform_5, window_bounds = array<i64: 32, 32>}, {pipeline_mode = #tpu.pipeline_mode<synchronous>, transform_indices = @transform_6, window_bounds = array<i64: 1, 32>}, {pipeline_mode = #tpu.pipeline_mode<synchronous>, transform_indices = @transform_7, window_bounds = array<i64: 32, 32>}, {pipeline_mode = #tpu.pipeline_mode<synchronous>, transform_indices = @transform_8, window_bounds = array<i64: 1, 32>}, {pipeline_mode = #tpu.pipeline_mode<synchronous>, transform_indices = @transform_9, window_bounds = array<i64: 32, 32>}, {pipeline_mode = #tpu.pipeline_mode<synchronous>, transform_indices = @transform_10, window_bounds = array<i64: 1, 32>}, {transform_indices = @transform_11, window_bounds = array<i64: 1, 8, 32>}]} {
    %c0_i32 = arith.constant 0 : i32
    %0 = arith.cmpi eq, %arg1, %c0_i32 : i32
    %1 = arith.extui %0 : i1 to i32
    %c0_i32_0 = arith.constant 0 : i32
    %2 = arith.cmpi ne, %1, %c0_i32_0 : i32
    scf.if %2 {
      %c0_42 = arith.constant 0 : index
      %c0_43 = arith.constant 0 : index
      %c0_44 = arith.constant 0 : index
      %85 = vector.load %arg3[%c0_42, %c0_43, %c0_44] : memref<1x8x32xf32, #tpu.memory_space<vmem>>, vector<1x8x32xf32>
      %86 = vector.shape_cast %85 : vector<1x8x32xf32> to vector<8x32xf32>
      %c0_45 = arith.constant 0 : index
      %c0_46 = arith.constant 0 : index
      %c0_47 = arith.constant 0 : index
      %87 = vector.load %arg4[%c0_45, %c0_46, %c0_47] : memref<1x8x32xf32, #tpu.memory_space<vmem>>, vector<1x8x32xf32>
      %88 = vector.shape_cast %87 : vector<1x8x32xf32> to vector<8x32xf32>
      %c0_48 = arith.constant 0 : index
      %c0_49 = arith.constant 0 : index
      %89 = vector.load %arg7[%c0_48, %c0_49] : memref<32x32xf32, #tpu.memory_space<vmem>>, vector<32x32xf32>
      %cst_50 = arith.constant dense<0.000000e+00> : vector<8x32xf32>
      %90 = tpu.matmul %86, %89, %cst_50 {dimension_numbers = #tpu.dot_dimension_numbers<[1], [0], [0], [1], [0, 0, 1, 1], [], []>} : vector<8x32xf32>, vector<32x32xf32>, vector<8x32xf32> -> vector<8x32xf32>
      %c0_51 = arith.constant 0 : index
      %c0_52 = arith.constant 0 : index
      %91 = vector.load %arg8[%c0_51, %c0_52] : memref<1x32xf32, #tpu.memory_space<vmem>>, vector<1x32xf32>
      %92 = vector.shape_cast %91 : vector<1x32xf32> to vector<32xf32>
      %93 = vector.shape_cast %92 : vector<32xf32> to vector<1x32xf32>
      %94 = vector.broadcast %93 : vector<1x32xf32> to vector<8x32xf32>
      %95 = arith.addf %90, %94 : vector<8x32xf32>
      %c0_53 = arith.constant 0 : index
      %c0_54 = arith.constant 0 : index
      %96 = vector.load %arg14[%c0_53, %c0_54] : memref<8x32xf32, #tpu.memory_space<vmem>>, vector<8x32xf32>
      tpu.vector_store %arg14[%c0_53, %c0_54], %95 {strides = array<i32>} : memref<8x32xf32, #tpu.memory_space<vmem>>, vector<8x32xf32>,
      %c0_55 = arith.constant 0 : index
      %c0_56 = arith.constant 0 : index
      %97 = vector.load %arg9[%c0_55, %c0_56] : memref<32x32xf32, #tpu.memory_space<vmem>>, vector<32x32xf32>
      %cst_57 = arith.constant dense<0.000000e+00> : vector<8x32xf32>
      %98 = tpu.matmul %88, %97, %cst_57 {dimension_numbers = #tpu.dot_dimension_numbers<[1], [0], [0], [1], [0, 0, 1, 1], [], []>} : vector<8x32xf32>, vector<32x32xf32>, vector<8x32xf32> -> vector<8x32xf32>
      %c0_58 = arith.constant 0 : index
      %c0_59 = arith.constant 0 : index
      %99 = vector.load %arg10[%c0_58, %c0_59] : memref<1x32xf32, #tpu.memory_space<vmem>>, vector<1x32xf32>
      %100 = vector.shape_cast %99 : vector<1x32xf32> to vector<32xf32>
      %101 = vector.shape_cast %100 : vector<32xf32> to vector<1x32xf32>
      %102 = vector.broadcast %101 : vector<1x32xf32> to vector<8x32xf32>
      %103 = arith.addf %98, %102 : vector<8x32xf32>
      %c0_60 = arith.constant 0 : index
      %c0_61 = arith.constant 0 : index
      %104 = vector.load %arg15[%c0_60, %c0_61] : memref<8x32xf32, #tpu.memory_space<vmem>>, vector<8x32xf32>
      tpu.vector_store %arg15[%c0_60, %c0_61], %103 {strides = array<i32>} : memref<8x32xf32, #tpu.memory_space<vmem>>, vector<8x32xf32>,
    } else {
    }
    %c0 = arith.constant 0 : index
    %c0_1 = arith.constant 0 : index
    %c0_2 = arith.constant 0 : index
    %3 = vector.load %arg2[%c0, %c0_1, %c0_2] : memref<1x8x32xf32, #tpu.memory_space<vmem>>, vector<1x8x32xf32>
    %4 = vector.shape_cast %3 : vector<1x8x32xf32> to vector<8x32xf32>
    %c0_3 = arith.constant 0 : index
    %c0_4 = arith.constant 0 : index
    %5 = vector.load %arg5[%c0_3, %c0_4] : memref<32x32xf32, #tpu.memory_space<vmem>>, vector<32x32xf32>
    %cst = arith.constant dense<0.000000e+00> : vector<8x32xf32>
    %6 = tpu.matmul %4, %5, %cst {dimension_numbers = #tpu.dot_dimension_numbers<[1], [0], [0], [1], [0, 0, 1, 1], [], []>} : vector<8x32xf32>, vector<32x32xf32>, vector<8x32xf32> -> vector<8x32xf32>
    %c0_5 = arith.constant 0 : index
    %c0_6 = arith.constant 0 : index
    %7 = vector.load %arg6[%c0_5, %c0_6] : memref<1x32xf32, #tpu.memory_space<vmem>>, vector<1x32xf32>
    %8 = vector.shape_cast %7 : vector<1x32xf32> to vector<32xf32>
    %9 = vector.shape_cast %8 : vector<32xf32> to vector<1x32xf32>
    %10 = vector.broadcast %9 : vector<1x32xf32> to vector<8x32xf32>
    %11 = arith.addf %6, %10 : vector<8x32xf32>
    %c0_7 = arith.constant 0 : index
    %c0_8 = arith.constant 0 : index
    %12 = vector.load %arg14[%c0_7, %c0_8] : memref<8x32xf32, #tpu.memory_space<vmem>>, vector<8x32xf32>
    %c0_9 = arith.constant 0 : index
    %c0_10 = arith.constant 0 : index
    %13 = vector.load %arg15[%c0_9, %c0_10] : memref<8x32xf32, #tpu.memory_space<vmem>>, vector<8x32xf32>
    %14 = vector.extract_strided_slice %11 {offsets = [0, 0], sizes = [8, 8], strides = [1, 1]} : vector<8x32xf32> to vector<8x8xf32>
    %15 = vector.extract_strided_slice %12 {offsets = [0, 0], sizes = [8, 8], strides = [1, 1]} : vector<8x32xf32> to vector<8x8xf32>
    %16 = vector.extract_strided_slice %13 {offsets = [0, 0], sizes = [8, 8], strides = [1, 1]} : vector<8x32xf32> to vector<8x8xf32>
    %cst_11 = arith.constant dense<0.000000e+00> : vector<8x8xf32>
    %17 = tpu.matmul %14, %15, %cst_11 {dimension_numbers = #tpu.dot_dimension_numbers<[1], [1], [0], [0], [0, 0, 1, 0], [], []>} : vector<8x8xf32>, vector<8x8xf32>, vector<8x8xf32> -> vector<8x8xf32>
    %cst_12 = arith.constant dense<0xFF800000> : vector<8xf32>
    %18 = vector.multi_reduction <maximumf>, %17, %cst_12 [1] : vector<8x8xf32> to vector<8xf32>
    %19 = vector.shape_cast %18 : vector<8xf32> to vector<8x1xf32>
    %20 = vector.broadcast %19 : vector<8x1xf32> to vector<8x8xf32>
    %21 = arith.subf %17, %20 : vector<8x8xf32>
    %22 = math.exp %21 : vector<8x8xf32>
    %cst_13 = arith.constant dense<0.000000e+00> : vector<8xf32>
    %23 = vector.multi_reduction <add>, %22, %cst_13 [1] : vector<8x8xf32> to vector<8xf32>
    %24 = vector.shape_cast %23 : vector<8xf32> to vector<8x1xf32>
    %cst_14 = arith.constant dense<0.000000e+00> : vector<8x8xf32>
    %25 = tpu.matmul %22, %16, %cst_14 {dimension_numbers = #tpu.dot_dimension_numbers<[1], [0], [0], [1], [0, 0, 1, 1], [], []>} : vector<8x8xf32>, vector<8x8xf32>, vector<8x8xf32> -> vector<8x8xf32>
    %26 = vector.broadcast %24 : vector<8x1xf32> to vector<8x8xf32>
    %27 = arith.divf %25, %26 : vector<8x8xf32>
    %c0_15 = arith.constant 0 : index
    %c0_16 = arith.constant 0 : index
    %28 = vector.load %arg16[%c0_15, %c0_16] : memref<8x32xf32, #tpu.memory_space<vmem>>, vector<8x8xf32>
    tpu.vector_store %arg16[%c0_15, %c0_16], %27 {strides = array<i32>} : memref<8x32xf32, #tpu.memory_space<vmem>>, vector<8x8xf32>,
    %29 = vector.extract_strided_slice %11 {offsets = [0, 8], sizes = [8, 8], strides = [1, 1]} : vector<8x32xf32> to vector<8x8xf32>
    %30 = vector.extract_strided_slice %12 {offsets = [0, 8], sizes = [8, 8], strides = [1, 1]} : vector<8x32xf32> to vector<8x8xf32>
    %31 = vector.extract_strided_slice %13 {offsets = [0, 8], sizes = [8, 8], strides = [1, 1]} : vector<8x32xf32> to vector<8x8xf32>
    %cst_17 = arith.constant dense<0.000000e+00> : vector<8x8xf32>
    %32 = tpu.matmul %29, %30, %cst_17 {dimension_numbers = #tpu.dot_dimension_numbers<[1], [1], [0], [0], [0, 0, 1, 0], [], []>} : vector<8x8xf32>, vector<8x8xf32>, vector<8x8xf32> -> vector<8x8xf32>
    %cst_18 = arith.constant dense<0xFF800000> : vector<8xf32>
    %33 = vector.multi_reduction <maximumf>, %32, %cst_18 [1] : vector<8x8xf32> to vector<8xf32>
    %34 = vector.shape_cast %33 : vector<8xf32> to vector<8x1xf32>
    %35 = vector.broadcast %34 : vector<8x1xf32> to vector<8x8xf32>
    %36 = arith.subf %32, %35 : vector<8x8xf32>
    %37 = math.exp %36 : vector<8x8xf32>
    %cst_19 = arith.constant dense<0.000000e+00> : vector<8xf32>
    %38 = vector.multi_reduction <add>, %37, %cst_19 [1] : vector<8x8xf32> to vector<8xf32>
    %39 = vector.shape_cast %38 : vector<8xf32> to vector<8x1xf32>
    %cst_20 = arith.constant dense<0.000000e+00> : vector<8x8xf32>
    %40 = tpu.matmul %37, %31, %cst_20 {dimension_numbers = #tpu.dot_dimension_numbers<[1], [0], [0], [1], [0, 0, 1, 1], [], []>} : vector<8x8xf32>, vector<8x8xf32>, vector<8x8xf32> -> vector<8x8xf32>
    %41 = vector.broadcast %39 : vector<8x1xf32> to vector<8x8xf32>
    %42 = arith.divf %40, %41 : vector<8x8xf32>
    %c0_21 = arith.constant 0 : index
    %c8 = arith.constant 8 : index
    %43 = vector.load %arg16[%c0_21, %c8] : memref<8x32xf32, #tpu.memory_space<vmem>>, vector<8x8xf32>
    tpu.vector_store %arg16[%c0_21, %c8], %42 {strides = array<i32>} : memref<8x32xf32, #tpu.memory_space<vmem>>, vector<8x8xf32>,
    %44 = vector.extract_strided_slice %11 {offsets = [0, 16], sizes = [8, 8], strides = [1, 1]} : vector<8x32xf32> to vector<8x8xf32>
    %45 = vector.extract_strided_slice %12 {offsets = [0, 16], sizes = [8, 8], strides = [1, 1]} : vector<8x32xf32> to vector<8x8xf32>
    %46 = vector.extract_strided_slice %13 {offsets = [0, 16], sizes = [8, 8], strides = [1, 1]} : vector<8x32xf32> to vector<8x8xf32>
    %cst_22 = arith.constant dense<0.000000e+00> : vector<8x8xf32>
    %47 = tpu.matmul %44, %45, %cst_22 {dimension_numbers = #tpu.dot_dimension_numbers<[1], [1], [0], [0], [0, 0, 1, 0], [], []>} : vector<8x8xf32>, vector<8x8xf32>, vector<8x8xf32> -> vector<8x8xf32>
    %cst_23 = arith.constant dense<0xFF800000> : vector<8xf32>
    %48 = vector.multi_reduction <maximumf>, %47, %cst_23 [1] : vector<8x8xf32> to vector<8xf32>
    %49 = vector.shape_cast %48 : vector<8xf32> to vector<8x1xf32>
    %50 = vector.broadcast %49 : vector<8x1xf32> to vector<8x8xf32>
    %51 = arith.subf %47, %50 : vector<8x8xf32>
    %52 = math.exp %51 : vector<8x8xf32>
    %cst_24 = arith.constant dense<0.000000e+00> : vector<8xf32>
    %53 = vector.multi_reduction <add>, %52, %cst_24 [1] : vector<8x8xf32> to vector<8xf32>
    %54 = vector.shape_cast %53 : vector<8xf32> to vector<8x1xf32>
    %cst_25 = arith.constant dense<0.000000e+00> : vector<8x8xf32>
    %55 = tpu.matmul %52, %46, %cst_25 {dimension_numbers = #tpu.dot_dimension_numbers<[1], [0], [0], [1], [0, 0, 1, 1], [], []>} : vector<8x8xf32>, vector<8x8xf32>, vector<8x8xf32> -> vector<8x8xf32>
    %56 = vector.broadcast %54 : vector<8x1xf32> to vector<8x8xf32>
    %57 = arith.divf %55, %56 : vector<8x8xf32>
    %c0_26 = arith.constant 0 : index
    %c16 = arith.constant 16 : index
    %58 = vector.load %arg16[%c0_26, %c16] : memref<8x32xf32, #tpu.memory_space<vmem>>, vector<8x8xf32>
    tpu.vector_store %arg16[%c0_26, %c16], %57 {strides = array<i32>} : memref<8x32xf32, #tpu.memory_space<vmem>>, vector<8x8xf32>,
    %59 = vector.extract_strided_slice %11 {offsets = [0, 24], sizes = [8, 8], strides = [1, 1]} : vector<8x32xf32> to vector<8x8xf32>
    %60 = vector.extract_strided_slice %12 {offsets = [0, 24], sizes = [8, 8], strides = [1, 1]} : vector<8x32xf32> to vector<8x8xf32>
    %61 = vector.extract_strided_slice %13 {offsets = [0, 24], sizes = [8, 8], strides = [1, 1]} : vector<8x32xf32> to vector<8x8xf32>
    %cst_27 = arith.constant dense<0.000000e+00> : vector<8x8xf32>
    %62 = tpu.matmul %59, %60, %cst_27 {dimension_numbers = #tpu.dot_dimension_numbers<[1], [1], [0], [0], [0, 0, 1, 0], [], []>} : vector<8x8xf32>, vector<8x8xf32>, vector<8x8xf32> -> vector<8x8xf32>
    %cst_28 = arith.constant dense<0xFF800000> : vector<8xf32>
    %63 = vector.multi_reduction <maximumf>, %62, %cst_28 [1] : vector<8x8xf32> to vector<8xf32>
    %64 = vector.shape_cast %63 : vector<8xf32> to vector<8x1xf32>
    %65 = vector.broadcast %64 : vector<8x1xf32> to vector<8x8xf32>
    %66 = arith.subf %62, %65 : vector<8x8xf32>
    %67 = math.exp %66 : vector<8x8xf32>
    %cst_29 = arith.constant dense<0.000000e+00> : vector<8xf32>
    %68 = vector.multi_reduction <add>, %67, %cst_29 [1] : vector<8x8xf32> to vector<8xf32>
    %69 = vector.shape_cast %68 : vector<8xf32> to vector<8x1xf32>
    %cst_30 = arith.constant dense<0.000000e+00> : vector<8x8xf32>
    %70 = tpu.matmul %67, %61, %cst_30 {dimension_numbers = #tpu.dot_dimension_numbers<[1], [0], [0], [1], [0, 0, 1, 1], [], []>} : vector<8x8xf32>, vector<8x8xf32>, vector<8x8xf32> -> vector<8x8xf32>
    %71 = vector.broadcast %69 : vector<8x1xf32> to vector<8x8xf32>
    %72 = arith.divf %70, %71 : vector<8x8xf32>
    %c0_31 = arith.constant 0 : index
    %c24 = arith.constant 24 : index
    %73 = vector.load %arg16[%c0_31, %c24] : memref<8x32xf32, #tpu.memory_space<vmem>>, vector<8x8xf32>
    tpu.vector_store %arg16[%c0_31, %c24], %72 {strides = array<i32>} : memref<8x32xf32, #tpu.memory_space<vmem>>, vector<8x8xf32>,
    %c0_32 = arith.constant 0 : index
    %c0_33 = arith.constant 0 : index
    %74 = vector.load %arg16[%c0_32, %c0_33] : memref<8x32xf32, #tpu.memory_space<vmem>>, vector<8x32xf32>
    %c0_34 = arith.constant 0 : index
    %c0_35 = arith.constant 0 : index
    %75 = vector.load %arg11[%c0_34, %c0_35] : memref<32x32xf32, #tpu.memory_space<vmem>>, vector<32x32xf32>
    %cst_36 = arith.constant dense<0.000000e+00> : vector<8x32xf32>
    %76 = tpu.matmul %74, %75, %cst_36 {dimension_numbers = #tpu.dot_dimension_numbers<[1], [0], [0], [1], [0, 0, 1, 1], [], []>} : vector<8x32xf32>, vector<32x32xf32>, vector<8x32xf32> -> vector<8x32xf32>
    %c0_37 = arith.constant 0 : index
    %c0_38 = arith.constant 0 : index
    %77 = vector.load %arg12[%c0_37, %c0_38] : memref<1x32xf32, #tpu.memory_space<vmem>>, vector<1x32xf32>
    %78 = vector.shape_cast %77 : vector<1x32xf32> to vector<32xf32>
    %79 = vector.shape_cast %78 : vector<32xf32> to vector<1x32xf32>
    %80 = vector.broadcast %79 : vector<1x32xf32> to vector<8x32xf32>
    %81 = arith.addf %76, %80 : vector<8x32xf32>
    %c0_39 = arith.constant 0 : index
    %c0_40 = arith.constant 0 : index
    %c0_41 = arith.constant 0 : index
    %82 = vector.load %arg13[%c0_39, %c0_40, %c0_41] : memref<1x8x32xf32, #tpu.memory_space<vmem>>, vector<1x8x32xf32>
    %83 = vector.shape_cast %82 : vector<1x8x32xf32> to vector<8x32xf32>
    %84 = vector.shape_cast %81 : vector<8x32xf32> to vector<1x8x32xf32>
    tpu.vector_store %arg13[%c0_39, %c0_40, %c0_41], %84 {strides = array<i32>} : memref<1x8x32xf32, #tpu.memory_space<vmem>>, vector<1x8x32xf32>,
    return
  }
  func.func @transform_0(%arg0: i32, %arg1: i32) -> (i32, i32, i32) {
    %c0_i32 = arith.constant 0 : i32
    %c0_i32_0 = arith.constant 0 : i32
    return %arg0, %arg1, %c0_i32 : i32, i32, i32
  }
  func.func @transform_1(%arg0: i32, %arg1: i32) -> (i32, i32, i32) {
    %c0_i32 = arith.constant 0 : i32
    %c0_i32_0 = arith.constant 0 : i32
    %c0_i32_1 = arith.constant 0 : i32
    return %arg0, %c0_i32, %c0_i32_0 : i32, i32, i32
  }
  func.func @transform_2(%arg0: i32, %arg1: i32) -> (i32, i32, i32) {
    %c0_i32 = arith.constant 0 : i32
    %c0_i32_0 = arith.constant 0 : i32
    %c0_i32_1 = arith.constant 0 : i32
    return %arg0, %c0_i32, %c0_i32_0 : i32, i32, i32
  }
  func.func @transform_3(%arg0: i32, %arg1: i32) -> (i32, i32) {
    %c0_i32 = arith.constant 0 : i32
    %c0_i32_0 = arith.constant 0 : i32
    %c0_i32_1 = arith.constant 0 : i32
    return %c0_i32, %c0_i32_0 : i32, i32
  }
  func.func @transform_4(%arg0: i32, %arg1: i32) -> (i32, i32) {
    %c0_i32 = arith.constant 0 : i32
    %c0_i32_0 = arith.constant 0 : i32
    %c0_i32_1 = arith.constant 0 : i32
    return %c0_i32, %c0_i32_0 : i32, i32
  }
  func.func @transform_5(%arg0: i32, %arg1: i32) -> (i32, i32) {
    %c0_i32 = arith.constant 0 : i32
    %c0_i32_0 = arith.constant 0 : i32
    %c0_i32_1 = arith.constant 0 : i32
    return %c0_i32, %c0_i32_0 : i32, i32
  }
  func.func @transform_6(%arg0: i32, %arg1: i32) -> (i32, i32) {
    %c0_i32 = arith.constant 0 : i32
    %c0_i32_0 = arith.constant 0 : i32
    %c0_i32_1 = arith.constant 0 : i32
    return %c0_i32, %c0_i32_0 : i32, i32
  }
  func.func @transform_7(%arg0: i32, %arg1: i32) -> (i32, i32) {
    %c0_i32 = arith.constant 0 : i32
    %c0_i32_0 = arith.constant 0 : i32
    %c0_i32_1 = arith.constant 0 : i32
    return %c0_i32, %c0_i32_0 : i32, i32
  }
  func.func @transform_8(%arg0: i32, %arg1: i32) -> (i32, i32) {
    %c0_i32 = arith.constant 0 : i32
    %c0_i32_0 = arith.constant 0 : i32
    %c0_i32_1 = arith.constant 0 : i32
    return %c0_i32, %c0_i32_0 : i32, i32
  }
  func.func @transform_9(%arg0: i32, %arg1: i32) -> (i32, i32) {
    %c0_i32 = arith.constant 0 : i32
    %c0_i32_0 = arith.constant 0 : i32
    %c0_i32_1 = arith.constant 0 : i32
    return %c0_i32, %c0_i32_0 : i32, i32
  }
  func.func @transform_10(%arg0: i32, %arg1: i32) -> (i32, i32) {
    %c0_i32 = arith.constant 0 : i32
    %c0_i32_0 = arith.constant 0 : i32
    %c0_i32_1 = arith.constant 0 : i32
    return %c0_i32, %c0_i32_0 : i32, i32
  }
  func.func @transform_11(%arg0: i32, %arg1: i32) -> (i32, i32, i32) {
    %c0_i32 = arith.constant 0 : i32
    %c0_i32_0 = arith.constant 0 : i32
    return %arg0, %arg1, %c0_i32 : i32, i32, i32
  }
}

module attributes {stable_mosaic.version = 11 : i64} {
  func.func @_mha_kernel(%arg0: i32, %arg1: i32, %arg2: memref<1x8x32xf32, #tpu.memory_space<vmem>>, %arg3: memref<1x8x32xf32, #tpu.memory_space<vmem>>, %arg4: memref<1x8x32xf32, #tpu.memory_space<vmem>>, %arg5: memref<32x32xf32, #tpu.memory_space<vmem>>, %arg6: memref<1x32xf32, #tpu.memory_space<vmem>>, %arg7: memref<32x32xf32, #tpu.memory_space<vmem>>, %arg8: memref<1x32xf32, #tpu.memory_space<vmem>>, %arg9: memref<32x32xf32, #tpu.memory_space<vmem>>, %arg10: memref<1x32xf32, #tpu.memory_space<vmem>>, %arg11: memref<32x32xf32, #tpu.memory_space<vmem>>, %arg12: memref<1x32xf32, #tpu.memory_space<vmem>>, %arg13: memref<1x8x32xf32, #tpu.memory_space<vmem>>, %arg14: memref<8x32xf32, #tpu.memory_space<vmem>>, %arg15: memref<8x32xf32, #tpu.memory_space<vmem>>, %arg16: memref<8x32xf32, #tpu.memory_space<vmem>>) attributes {dimension_semantics = [#tpu.dimension_semantics<parallel>, #tpu.dimension_semantics<arbitrary>], iteration_bounds = array<i64: 2, 1>, scalar_prefetch = 0 : i64, scratch_operands = 3 : i64, tpu.core_type = #tpu.core_type<tc>, window_params = [{transform_indices = @transform_0, window_bounds = array<i64: 1, 8, 32>}, {transform_indices = @transform_1, window_bounds = array<i64: 1, 8, 32>}, {transform_indices = @transform_2, window_bounds = array<i64: 1, 8, 32>}, {pipeline_mode = #tpu.pipeline_mode<synchronous>, transform_indices = @transform_3, window_bounds = array<i64: 32, 32>}, {pipeline_mode = #tpu.pipeline_mode<synchronous>, transform_indices = @transform_4, window_bounds = array<i64: 1, 32>}, {pipeline_mode = #tpu.pipeline_mode<synchronous>, transform_indices = @transform_5, window_bounds = array<i64: 32, 32>}, {pipeline_mode = #tpu.pipeline_mode<synchronous>, transform_indices = @transform_6, window_bounds = array<i64: 1, 32>}, {pipeline_mode = #tpu.pipeline_mode<synchronous>, transform_indices = @transform_7, window_bounds = array<i64: 32, 32>}, {pipeline_mode = #tpu.pipeline_mode<synchronous>, transform_indices = @transform_8, window_bounds = array<i64: 1, 32>}, {pipeline_mode = #tpu.pipeline_mode<synchronous>, transform_indices = @transform_9, window_bounds = array<i64: 32, 32>}, {pipeline_mode = #tpu.pipeline_mode<synchronous>, transform_indices = @transform_10, window_bounds = array<i64: 1, 32>}, {transform_indices = @transform_11, window_bounds = array<i64: 1, 8, 32>}]} {
    %c0_i32 = arith.constant 0 : i32
    %0 = arith.cmpi eq, %arg1, %c0_i32 : i32
    %1 = arith.extui %0 : i1 to i32
    %c0_i32_0 = arith.constant 0 : i32
    %2 = arith.cmpi ne, %1, %c0_i32_0 : i32
    scf.if %2 {
      %c0_42 = arith.constant 0 : index
      %c0_43 = arith.constant 0 : index
      %c0_44 = arith.constant 0 : index
      %85 = vector.load %arg3[%c0_42, %c0_43, %c0_44] : memref<1x8x32xf32, #tpu.memory_space<vmem>>, vector<1x8x32xf32>
      %86 = vector.shape_cast %85 : vector<1x8x32xf32> to vector<8x32xf32>
      %c0_45 = arith.constant 0 : index
      %c0_46 = arith.constant 0 : index
      %c0_47 = arith.constant 0 : index
      %87 = vector.load %arg4[%c0_45, %c0_46, %c0_47] : memref<1x8x32xf32, #tpu.memory_space<vmem>>, vector<1x8x32xf32>
      %88 = vector.shape_cast %87 : vector<1x8x32xf32> to vector<8x32xf32>
      %c0_48 = arith.constant 0 : index
      %c0_49 = arith.constant 0 : index
      %89 = vector.load %arg7[%c0_48, %c0_49] : memref<32x32xf32, #tpu.memory_space<vmem>>, vector<32x32xf32>
      %cst_50 = arith.constant dense<0.000000e+00> : vector<8x32xf32>
      %90 = tpu.matmul %86, %89, %cst_50 {dimension_numbers = #tpu.dot_dimension_numbers<[1], [0], [0], [1], [0, 0, 1, 1], [], []>} : vector<8x32xf32>, vector<32x32xf32>, vector<8x32xf32> -> vector<8x32xf32>
      %c0_51 = arith.constant 0 : index
      %c0_52 = arith.constant 0 : index
      %91 = vector.load %arg8[%c0_51, %c0_52] : memref<1x32xf32, #tpu.memory_space<vmem>>, vector<1x32xf32>
      %92 = vector.shape_cast %91 : vector<1x32xf32> to vector<32xf32>
      %93 = vector.shape_cast %92 : vector<32xf32> to vector<1x32xf32>
      %94 = vector.broadcast %93 : vector<1x32xf32> to vector<8x32xf32>
      %95 = arith.addf %90, %94 : vector<8x32xf32>
      %c0_53 = arith.constant 0 : index
      %c0_54 = arith.constant 0 : index
      %96 = vector.load %arg14[%c0_53, %c0_54] : memref<8x32xf32, #tpu.memory_space<vmem>>, vector<8x32xf32>
      tpu.vector_store %arg14[%c0_53, %c0_54], %95 {strides = array<i32>} : memref<8x32xf32, #tpu.memory_space<vmem>>, vector<8x32xf32>,
      %c0_55 = arith.constant 0 : index
      %c0_56 = arith.constant 0 : index
      %97 = vector.load %arg9[%c0_55, %c0_56] : memref<32x32xf32, #tpu.memory_space<vmem>>, vector<32x32xf32>
      %cst_57 = arith.constant dense<0.000000e+00> : vector<8x32xf32>
      %98 = tpu.matmul %88, %97, %cst_57 {dimension_numbers = #tpu.dot_dimension_numbers<[1], [0], [0], [1], [0, 0, 1, 1], [], []>} : vector<8x32xf32>, vector<32x32xf32>, vector<8x32xf32> -> vector<8x32xf32>
      %c0_58 = arith.constant 0 : index
      %c0_59 = arith.constant 0 : index
      %99 = vector.load %arg10[%c0_58, %c0_59] : memref<1x32xf32, #tpu.memory_space<vmem>>, vector<1x32xf32>
      %100 = vector.shape_cast %99 : vector<1x32xf32> to vector<32xf32>
      %101 = vector.shape_cast %100 : vector<32xf32> to vector<1x32xf32>
      %102 = vector.broadcast %101 : vector<1x32xf32> to vector<8x32xf32>
      %103 = arith.addf %98, %102 : vector<8x32xf32>
      %c0_60 = arith.constant 0 : index
      %c0_61 = arith.constant 0 : index
      %104 = vector.load %arg15[%c0_60, %c0_61] : memref<8x32xf32, #tpu.memory_space<vmem>>, vector<8x32xf32>
      tpu.vector_store %arg15[%c0_60, %c0_61], %103 {strides = array<i32>} : memref<8x32xf32, #tpu.memory_space<vmem>>, vector<8x32xf32>,
    } else {
    }
    %c0 = arith.constant 0 : index
    %c0_1 = arith.constant 0 : index
    %c0_2 = arith.constant 0 : index
    %3 = vector.load %arg2[%c0, %c0_1, %c0_2] : memref<1x8x32xf32, #tpu.memory_space<vmem>>, vector<1x8x32xf32>
    %4 = vector.shape_cast %3 : vector<1x8x32xf32> to vector<8x32xf32>
    %c0_3 = arith.constant 0 : index
    %c0_4 = arith.constant 0 : index
    %5 = vector.load %arg5[%c0_3, %c0_4] : memref<32x32xf32, #tpu.memory_space<vmem>>, vector<32x32xf32>
    %cst = arith.constant dense<0.000000e+00> : vector<8x32xf32>
    %6 = tpu.matmul %4, %5, %cst {dimension_numbers = #tpu.dot_dimension_numbers<[1], [0], [0], [1], [0, 0, 1, 1], [], []>} : vector<8x32xf32>, vector<32x32xf32>, vector<8x32xf32> -> vector<8x32xf32>
    %c0_5 = arith.constant 0 : index
    %c0_6 = arith.constant 0 : index
    %7 = vector.load %arg6[%c0_5, %c0_6] : memref<1x32xf32, #tpu.memory_space<vmem>>, vector<1x32xf32>
    %8 = vector.shape_cast %7 : vector<1x32xf32> to vector<32xf32>
    %9 = vector.shape_cast %8 : vector<32xf32> to vector<1x32xf32>
    %10 = vector.broadcast %9 : vector<1x32xf32> to vector<8x32xf32>
    %11 = arith.addf %6, %10 : vector<8x32xf32>
    %c0_7 = arith.constant 0 : index
    %c0_8 = arith.constant 0 : index
    %12 = vector.load %arg14[%c0_7, %c0_8] : memref<8x32xf32, #tpu.memory_space<vmem>>, vector<8x32xf32>
    %c0_9 = arith.constant 0 : index
    %c0_10 = arith.constant 0 : index
    %13 = vector.load %arg15[%c0_9, %c0_10] : memref<8x32xf32, #tpu.memory_space<vmem>>, vector<8x32xf32>
    %14 = vector.extract_strided_slice %11 {offsets = [0, 0], sizes = [8, 8], strides = [1, 1]} : vector<8x32xf32> to vector<8x8xf32>
    %15 = vector.extract_strided_slice %12 {offsets = [0, 0], sizes = [8, 8], strides = [1, 1]} : vector<8x32xf32> to vector<8x8xf32>
    %16 = vector.extract_strided_slice %13 {offsets = [0, 0], sizes = [8, 8], strides = [1, 1]} : vector<8x32xf32> to vector<8x8xf32>
    %cst_11 = arith.constant dense<0.000000e+00> : vector<8x8xf32>
    %17 = tpu.matmul %14, %15, %cst_11 {dimension_numbers = #tpu.dot_dimension_numbers<[1], [1], [0], [0], [0, 0, 1, 0], [], []>} : vector<8x8xf32>, vector<8x8xf32>, vector<8x8xf32> -> vector<8x8xf32>
    %cst_12 = arith.constant dense<0xFF800000> : vector<8xf32>
    %18 = vector.multi_reduction <maximumf>, %17, %cst_12 [1] : vector<8x8xf32> to vector<8xf32>
    %19 = vector.shape_cast %18 : vector<8xf32> to vector<8x1xf32>
    %20 = vector.broadcast %19 : vector<8x1xf32> to vector<8x8xf32>
    %21 = arith.subf %17, %20 : vector<8x8xf32>
    %22 = math.exp %21 : vector<8x8xf32>
    %cst_13 = arith.constant dense<0.000000e+00> : vector<8xf32>
    %23 = vector.multi_reduction <add>, %22, %cst_13 [1] : vector<8x8xf32> to vector<8xf32>
    %24 = vector.shape_cast %23 : vector<8xf32> to vector<8x1xf32>
    %cst_14 = arith.constant dense<0.000000e+00> : vector<8x8xf32>
    %25 = tpu.matmul %22, %16, %cst_14 {dimension_numbers = #tpu.dot_dimension_numbers<[1], [0], [0], [1], [0, 0, 1, 1], [], []>} : vector<8x8xf32>, vector<8x8xf32>, vector<8x8xf32> -> vector<8x8xf32>
    %26 = vector.broadcast %24 : vector<8x1xf32> to vector<8x8xf32>
    %27 = arith.divf %25, %26 : vector<8x8xf32>
    %c0_15 = arith.constant 0 : index
    %c0_16 = arith.constant 0 : index
    %28 = vector.load %arg16[%c0_15, %c0_16] : memref<8x32xf32, #tpu.memory_space<vmem>>, vector<8x8xf32>
    tpu.vector_store %arg16[%c0_15, %c0_16], %27 {strides = array<i32>} : memref<8x32xf32, #tpu.memory_space<vmem>>, vector<8x8xf32>,
    %29 = vector.extract_strided_slice %11 {offsets = [0, 8], sizes = [8, 8], strides = [1, 1]} : vector<8x32xf32> to vector<8x8xf32>
    %30 = vector.extract_strided_slice %12 {offsets = [0, 8], sizes = [8, 8], strides = [1, 1]} : vector<8x32xf32> to vector<8x8xf32>
    %31 = vector.extract_strided_slice %13 {offsets = [0, 8], sizes = [8, 8], strides = [1, 1]} : vector<8x32xf32> to vector<8x8xf32>
    %cst_17 = arith.constant dense<0.000000e+00> : vector<8x8xf32>
    %32 = tpu.matmul %29, %30, %cst_17 {dimension_numbers = #tpu.dot_dimension_numbers<[1], [1], [0], [0], [0, 0, 1, 0], [], []>} : vector<8x8xf32>, vector<8x8xf32>, vector<8x8xf32> -> vector<8x8xf32>
    %cst_18 = arith.constant dense<0xFF800000> : vector<8xf32>
    %33 = vector.multi_reduction <maximumf>, %32, %cst_18 [1] : vector<8x8xf32> to vector<8xf32>
    %34 = vector.shape_cast %33 : vector<8xf32> to vector<8x1xf32>
    %35 = vector.broadcast %34 : vector<8x1xf32> to vector<8x8xf32>
    %36 = arith.subf %32, %35 : vector<8x8xf32>
    %37 = math.exp %36 : vector<8x8xf32>
    %cst_19 = arith.constant dense<0.000000e+00> : vector<8xf32>
    %38 = vector.multi_reduction <add>, %37, %cst_19 [1] : vector<8x8xf32> to vector<8xf32>
    %39 = vector.shape_cast %38 : vector<8xf32> to vector<8x1xf32>
    %cst_20 = arith.constant dense<0.000000e+00> : vector<8x8xf32>
    %40 = tpu.matmul %37, %31, %cst_20 {dimension_numbers = #tpu.dot_dimension_numbers<[1], [0], [0], [1], [0, 0, 1, 1], [], []>} : vector<8x8xf32>, vector<8x8xf32>, vector<8x8xf32> -> vector<8x8xf32>
    %41 = vector.broadcast %39 : vector<8x1xf32> to vector<8x8xf32>
    %42 = arith.divf %40, %41 : vector<8x8xf32>
    %c0_21 = arith.constant 0 : index
    %c8 = arith.constant 8 : index
    %43 = vector.load %arg16[%c0_21, %c8] : memref<8x32xf32, #tpu.memory_space<vmem>>, vector<8x8xf32>
    tpu.vector_store %arg16[%c0_21, %c8], %42 {strides = array<i32>} : memref<8x32xf32, #tpu.memory_space<vmem>>, vector<8x8xf32>,
    %44 = vector.extract_strided_slice %11 {offsets = [0, 16], sizes = [8, 8], strides = [1, 1]} : vector<8x32xf32> to vector<8x8xf32>
    %45 = vector.extract_strided_slice %12 {offsets = [0, 16], sizes = [8, 8], strides = [1, 1]} : vector<8x32xf32> to vector<8x8xf32>
    %46 = vector.extract_strided_slice %13 {offsets = [0, 16], sizes = [8, 8], strides = [1, 1]} : vector<8x32xf32> to vector<8x8xf32>
    %cst_22 = arith.constant dense<0.000000e+00> : vector<8x8xf32>
    %47 = tpu.matmul %44, %45, %cst_22 {dimension_numbers = #tpu.dot_dimension_numbers<[1], [1], [0], [0], [0, 0, 1, 0], [], []>} : vector<8x8xf32>, vector<8x8xf32>, vector<8x8xf32> -> vector<8x8xf32>
    %cst_23 = arith.constant dense<0xFF800000> : vector<8xf32>
    %48 = vector.multi_reduction <maximumf>, %47, %cst_23 [1] : vector<8x8xf32> to vector<8xf32>
    %49 = vector.shape_cast %48 : vector<8xf32> to vector<8x1xf32>
    %50 = vector.broadcast %49 : vector<8x1xf32> to vector<8x8xf32>
    %51 = arith.subf %47, %50 : vector<8x8xf32>
    %52 = math.exp %51 : vector<8x8xf32>
    %cst_24 = arith.constant dense<0.000000e+00> : vector<8xf32>
    %53 = vector.multi_reduction <add>, %52, %cst_24 [1] : vector<8x8xf32> to vector<8xf32>
    %54 = vector.shape_cast %53 : vector<8xf32> to vector<8x1xf32>
    %cst_25 = arith.constant dense<0.000000e+00> : vector<8x8xf32>
    %55 = tpu.matmul %52, %46, %cst_25 {dimension_numbers = #tpu.dot_dimension_numbers<[1], [0], [0], [1], [0, 0, 1, 1], [], []>} : vector<8x8xf32>, vector<8x8xf32>, vector<8x8xf32> -> vector<8x8xf32>
    %56 = vector.broadcast %54 : vector<8x1xf32> to vector<8x8xf32>
    %57 = arith.divf %55, %56 : vector<8x8xf32>
    %c0_26 = arith.constant 0 : index
    %c16 = arith.constant 16 : index
    %58 = vector.load %arg16[%c0_26, %c16] : memref<8x32xf32, #tpu.memory_space<vmem>>, vector<8x8xf32>
    tpu.vector_store %arg16[%c0_26, %c16], %57 {strides = array<i32>} : memref<8x32xf32, #tpu.memory_space<vmem>>, vector<8x8xf32>,
    %59 = vector.extract_strided_slice %11 {offsets = [0, 24], sizes = [8, 8], strides = [1, 1]} : vector<8x32xf32> to vector<8x8xf32>
    %60 = vector.extract_strided_slice %12 {offsets = [0, 24], sizes = [8, 8], strides = [1, 1]} : vector<8x32xf32> to vector<8x8xf32>
    %61 = vector.extract_strided_slice %13 {offsets = [0, 24], sizes = [8, 8], strides = [1, 1]} : vector<8x32xf32> to vector<8x8xf32>
    %cst_27 = arith.constant dense<0.000000e+00> : vector<8x8xf32>
    %62 = tpu.matmul %59, %60, %cst_27 {dimension_numbers = #tpu.dot_dimension_numbers<[1], [1], [0], [0], [0, 0, 1, 0], [], []>} : vector<8x8xf32>, vector<8x8xf32>, vector<8x8xf32> -> vector<8x8xf32>
    %cst_28 = arith.constant dense<0xFF800000> : vector<8xf32>
    %63 = vector.multi_reduction <maximumf>, %62, %cst_28 [1] : vector<8x8xf32> to vector<8xf32>
    %64 = vector.shape_cast %63 : vector<8xf32> to vector<8x1xf32>
    %65 = vector.broadcast %64 : vector<8x1xf32> to vector<8x8xf32>
    %66 = arith.subf %62, %65 : vector<8x8xf32>
    %67 = math.exp %66 : vector<8x8xf32>
    %cst_29 = arith.constant dense<0.000000e+00> : vector<8xf32>
    %68 = vector.multi_reduction <add>, %67, %cst_29 [1] : vector<8x8xf32> to vector<8xf32>
    %69 = vector.shape_cast %68 : vector<8xf32> to vector<8x1xf32>
    %cst_30 = arith.constant dense<0.000000e+00> : vector<8x8xf32>
    %70 = tpu.matmul %67, %61, %cst_30 {dimension_numbers = #tpu.dot_dimension_numbers<[1], [0], [0], [1], [0, 0, 1, 1], [], []>} : vector<8x8xf32>, vector<8x8xf32>, vector<8x8xf32> -> vector<8x8xf32>
    %71 = vector.broadcast %69 : vector<8x1xf32> to vector<8x8xf32>
    %72 = arith.divf %70, %71 : vector<8x8xf32>
    %c0_31 = arith.constant 0 : index
    %c24 = arith.constant 24 : index
    %73 = vector.load %arg16[%c0_31, %c24] : memref<8x32xf32, #tpu.memory_space<vmem>>, vector<8x8xf32>
    tpu.vector_store %arg16[%c0_31, %c24], %72 {strides = array<i32>} : memref<8x32xf32, #tpu.memory_space<vmem>>, vector<8x8xf32>,
    %c0_32 = arith.constant 0 : index
    %c0_33 = arith.constant 0 : index
    %74 = vector.load %arg16[%c0_32, %c0_33] : memref<8x32xf32, #tpu.memory_space<vmem>>, vector<8x32xf32>
    %c0_34 = arith.constant 0 : index
    %c0_35 = arith.constant 0 : index
    %75 = vector.load %arg11[%c0_34, %c0_35] : memref<32x32xf32, #tpu.memory_space<vmem>>, vector<32x32xf32>
    %cst_36 = arith.constant dense<0.000000e+00> : vector<8x32xf32>
    %76 = tpu.matmul %74, %75, %cst_36 {dimension_numbers = #tpu.dot_dimension_numbers<[1], [0], [0], [1], [0, 0, 1, 1], [], []>} : vector<8x32xf32>, vector<32x32xf32>, vector<8x32xf32> -> vector<8x32xf32>
    %c0_37 = arith.constant 0 : index
    %c0_38 = arith.constant 0 : index
    %77 = vector.load %arg12[%c0_37, %c0_38] : memref<1x32xf32, #tpu.memory_space<vmem>>, vector<1x32xf32>
    %78 = vector.shape_cast %77 : vector<1x32xf32> to vector<32xf32>
    %79 = vector.shape_cast %78 : vector<32xf32> to vector<1x32xf32>
    %80 = vector.broadcast %79 : vector<1x32xf32> to vector<8x32xf32>
    %81 = arith.addf %76, %80 : vector<8x32xf32>
    %c0_39 = arith.constant 0 : index
    %c0_40 = arith.constant 0 : index
    %c0_41 = arith.constant 0 : index
    %82 = vector.load %arg13[%c0_39, %c0_40, %c0_41] : memref<1x8x32xf32, #tpu.memory_space<vmem>>, vector<1x8x32xf32>
    %83 = vector.shape_cast %82 : vector<1x8x32xf32> to vector<8x32xf32>
    %84 = vector.shape_cast %81 : vector<8x32xf32> to vector<1x8x32xf32>
    tpu.vector_store %arg13[%c0_39, %c0_40, %c0_41], %84 {strides = array<i32>} : memref<1x8x32xf32, #tpu.memory_space<vmem>>, vector<1x8x32xf32>,
    return
  }
  func.func @transform_0(%arg0: i32, %arg1: i32) -> (i32, i32, i32) {
    %c0_i32 = arith.constant 0 : i32
    %c0_i32_0 = arith.constant 0 : i32
    return %arg0, %arg1, %c0_i32 : i32, i32, i32
  }
  func.func @transform_1(%arg0: i32, %arg1: i32) -> (i32, i32, i32) {
    %c0_i32 = arith.constant 0 : i32
    %c0_i32_0 = arith.constant 0 : i32
    %c0_i32_1 = arith.constant 0 : i32
    return %arg0, %c0_i32, %c0_i32_0 : i32, i32, i32
  }
  func.func @transform_2(%arg0: i32, %arg1: i32) -> (i32, i32, i32) {
    %c0_i32 = arith.constant 0 : i32
    %c0_i32_0 = arith.constant 0 : i32
    %c0_i32_1 = arith.constant 0 : i32
    return %arg0, %c0_i32, %c0_i32_0 : i32, i32, i32
  }
  func.func @transform_3(%arg0: i32, %arg1: i32) -> (i32, i32) {
    %c0_i32 = arith.constant 0 : i32
    %c0_i32_0 = arith.constant 0 : i32
    %c0_i32_1 = arith.constant 0 : i32
    return %c0_i32, %c0_i32_0 : i32, i32
  }
  func.func @transform_4(%arg0: i32, %arg1: i32) -> (i32, i32) {
    %c0_i32 = arith.constant 0 : i32
    %c0_i32_0 = arith.constant 0 : i32
    %c0_i32_1 = arith.constant 0 : i32
    return %c0_i32, %c0_i32_0 : i32, i32
  }
  func.func @transform_5(%arg0: i32, %arg1: i32) -> (i32, i32) {
    %c0_i32 = arith.constant 0 : i32
    %c0_i32_0 = arith.constant 0 : i32
    %c0_i32_1 = arith.constant 0 : i32
    return %c0_i32, %c0_i32_0 : i32, i32
  }
  func.func @transform_6(%arg0: i32, %arg1: i32) -> (i32, i32) {
    %c0_i32 = arith.constant 0 : i32
    %c0_i32_0 = arith.constant 0 : i32
    %c0_i32_1 = arith.constant 0 : i32
    return %c0_i32, %c0_i32_0 : i32, i32
  }
  func.func @transform_7(%arg0: i32, %arg1: i32) -> (i32, i32) {
    %c0_i32 = arith.constant 0 : i32
    %c0_i32_0 = arith.constant 0 : i32
    %c0_i32_1 = arith.constant 0 : i32
    return %c0_i32, %c0_i32_0 : i32, i32
  }
  func.func @transform_8(%arg0: i32, %arg1: i32) -> (i32, i32) {
    %c0_i32 = arith.constant 0 : i32
    %c0_i32_0 = arith.constant 0 : i32
    %c0_i32_1 = arith.constant 0 : i32
    return %c0_i32, %c0_i32_0 : i32, i32
  }
  func.func @transform_9(%arg0: i32, %arg1: i32) -> (i32, i32) {
    %c0_i32 = arith.constant 0 : i32
    %c0_i32_0 = arith.constant 0 : i32
    %c0_i32_1 = arith.constant 0 : i32
    return %c0_i32, %c0_i32_0 : i32, i32
  }
  func.func @transform_10(%arg0: i32, %arg1: i32) -> (i32, i32) {
    %c0_i32 = arith.constant 0 : i32
    %c0_i32_0 = arith.constant 0 : i32
    %c0_i32_1 = arith.constant 0 : i32
    return %c0_i32, %c0_i32_0 : i32, i32
  }
  func.func @transform_11(%arg0: i32, %arg1: i32) -> (i32, i32, i32) {
    %c0_i32 = arith.constant 0 : i32
    %c0_i32_0 = arith.constant 0 : i32
    return %arg0, %arg1, %c0_i32 : i32, i32, i32
  }
}

</mosaic_0001>

<llo_original>
// kernel: tpu_custom_call.1
$region0: #{tpu_custom_call.1}
  #allocation0 [shape = 'u32[]', space=smem, size = 0x4, offset = 0x4, fixed_abs, tag = 'smem constant byte address 0x4 - core index']
  #allocation1 [shape = 'u32[72,128]{1,0:T(1,128)}', space=vmem, size = 0x9000, scoped, tag = 'internal scratch']
  #allocation2 [shape = 'f32[8,32]{1,0:T(8,128)}', space=vmem, size = 0x1000, scoped, tag = 'scratch operand']
  #allocation3 [shape = 'f32[8,32]{1,0:T(8,128)}', space=vmem, size = 0x1000, scoped, tag = 'scratch operand']
  #allocation4 [shape = 'f32[8,32]{1,0:T(8,128)}', space=vmem, size = 0x1000, scoped, tag = 'scratch operand']
  %s0 = inlined_call_operand.hbm [shape: f32[2,8,32], index: 0, kind: input, shape index: {}]
  %s1 = inlined_call_operand.hbm [shape: f32[2,8,32], index: 1, kind: input, shape index: {}]
  %s2 = inlined_call_operand.hbm [shape: f32[2,8,32], index: 2, kind: input, shape index: {}]
  %s3 = inlined_call_operand.hbm [shape: f32[32,32], index: 3, kind: input, shape index: {}]
  %s4 = inlined_call_operand.vmem [shape: f32[1,32], index: 4, kind: input, shape index: {}]
  %s5 = inlined_call_operand.hbm [shape: f32[32,32], index: 5, kind: input, shape index: {}]
  %s6 = inlined_call_operand.vmem [shape: f32[1,32], index: 6, kind: input, shape index: {}]
  %s7 = inlined_call_operand.hbm [shape: f32[32,32], index: 7, kind: input, shape index: {}]
  %s8 = inlined_call_operand.vmem [shape: f32[1,32], index: 8, kind: input, shape index: {}]
  %s9 = inlined_call_operand.hbm [shape: f32[32,32], index: 9, kind: input, shape index: {}]
  %s10 = inlined_call_operand.vmem [shape: f32[1,32], index: 10, kind: input, shape index: {}]
  %s11 = inlined_call_operand.hbm [shape: f32[2,8,32], index: 11, kind: output, shape index: {}]
  %s12 = sld [smem:[#allocation0]]
  $region109: #{tpu_custom_call.1} parent=0
    _
  %s14 = ssub.s32 1, %s12
  %s15 = scalar_select 0, %s14, %s12
  $region1: #{tpu_custom_call.1} parent=0
    #allocation5 [shape = 'u8[8192]{0}', space=vmem, size = 0x2000, scoped, tag = 'input window, operand 0']
    #allocation6 [shape = 's32[2]{0}', space=sflag, size = 0x8, scoped, tag = 'scoped memory for tpu_custom_call.1']
    #allocation7 [shape = 's32[2]{0}', space=sflag, size = 0x8, scoped, tag = 'scoped memory for tpu_custom_call.1']
    #allocation8 [shape = 'u8[8192]{0}', space=vmem, size = 0x2000, scoped, tag = 'input window, operand 1']
    #allocation9 [shape = 's32[2]{0}', space=sflag, size = 0x8, scoped, tag = 'scoped memory for tpu_custom_call.1']
    #allocation10 [shape = 'u8[8192]{0}', space=vmem, size = 0x2000, scoped, tag = 'input window, operand 2']
    #allocation11 [shape = 'u8[16384]{0}', space=vmem, size = 0x4000, scoped, tag = 'input window, operand 3, single buffered']
    #allocation12 [shape = 's32[1]{0}', space=sflag, size = 0x4, scoped, tag = 'scoped memory for tpu_custom_call.1']
    #allocation13 [shape = 'u8[16384]{0}', space=vmem, size = 0x4000, scoped, tag = 'input window, operand 5, single buffered']
    #allocation14 [shape = 'u8[16384]{0}', space=vmem, size = 0x4000, scoped, tag = 'input window, operand 7, single buffered']
    #allocation15 [shape = 's32[1]{0}', space=sflag, size = 0x4, scoped, tag = 'scoped memory for tpu_custom_call.1']
    #allocation16 [shape = 'u8[16384]{0}', space=vmem, size = 0x4000, scoped, tag = 'input window, operand 9, single buffered']
    #allocation17 [shape = 'u8[8192]{0}', space=vmem, size = 0x2000, scoped, tag = 'output window, operand 0']
    %16 = vsyncpa [#allocation6], 0
    %s17 = scalar_lea.sflag [#allocation6], 1
    %18 = vsyncpa %s17, 0
    %19 = vsyncpa [#allocation9], 0
    %s20 = scalar_lea.sflag [#allocation9], 1
    %21 = vsyncpa %s20, 0
    %22 = vsyncpa [#allocation12], 0
    %23 = vsyncpa [#allocation15], 0
    %24 = vsyncpa [#allocation7], 0
    %s25 = scalar_lea.sflag [#allocation7], 1
    %26 = vsyncpa %s25, 0
    loop: start=0, step=1, limit=4
    $region2: #{tpu_custom_call.1} parent=1 // loop_pre_header
      _
    $region3: #{tpu_custom_call.1} parent=1 // loop_header
      %s28 = sphi 0, %s32
      %p29 = scmp.ge.s32.totalorder %s28, 4
      %s35 = sphi 0, %s47
      %s36 = sphi 0, %s43
      %s37 = sphi 0, %s35
      %s38 = sphi 0, %s36
      %s39 = sphi 0, %s37
      %s40 = sphi 0, %s38
      %s52 = sphi 0, %s54
      %s55 = sphi 0, %s52
      %s56 = sphi 0, %s55
      %s72 = sphi 0, %s56
      %s78 = sphi 0, %s80
      %s81 = sphi 0, %s78
      %s82 = sphi 0, %s81
      %s98 = sphi 0, %s82
      %s104 = sphi 0, %s106
      %s107 = sphi 0, %s104
      %s108 = sphi 0, %s107
      %s124 = sphi 0, %s108
      %s128 = sphi 0, %s128
      %s130 = sphi 0, %s128
      %s131 = sphi 0, %s130
      %s145 = sphi 0, %s131
      %s149 = sphi 0, %s149
      %s151 = sphi 0, %s149
      %s152 = sphi 0, %s151
      %s166 = sphi 0, %s152
      %s170 = sphi 0, %s170
      %s172 = sphi 0, %s170
      %s173 = sphi 0, %s172
      %s187 = sphi 0, %s173
      %s191 = sphi 0, %s191
      %s193 = sphi 0, %s191
      %s194 = sphi 0, %s193
      %s208 = sphi 0, %s194
      %s212 = sphi 0, %s212
      %s214 = sphi 0, %s212
      %s215 = sphi 0, %s214
      %s229 = sphi 0, %s215
      %s233 = sphi 0, %s233
      %s235 = sphi 0, %s233
      %s236 = sphi 0, %s235
      %s250 = sphi 0, %s236
      %s254 = sphi 0, %s254
      %s256 = sphi 0, %s254
      %s257 = sphi 0, %s256
      %s271 = sphi 0, %s257
      %s275 = sphi 0, %s275
      %s277 = sphi 0, %s275
      %s278 = sphi 0, %s277
      %s292 = sphi 0, %s278
      %s300 = sphi 0, %s302
      %s303 = sphi 0, %s300
      %s304 = sphi 0, %s303
      %s320 = sphi 0, %s304
    $region4: #{tpu_custom_call.1} parent=1 // loop_header_branch
      %31 = sbr.rel (%p29) target = $region8
    $region5: #{tpu_custom_call.1} parent=1 // loop_body
      %s33 = ssub.s32 %s28, 1
      %s34 = ssub.s32 %s28, 2
      %s41 = sadd.s32 1, %s36
      %p42 = scmp.ge.s32.totalorder %s41, 1
      %s43 = scalar_select %p42, 0, %s41
      %s44 = sadd.s32 1, %s35
      %s45 = scalar_select %p42, %s44, %s35
      %p46 = scmp.ge.s32.totalorder %s45, 2
      %s47 = scalar_select %p46, 0, %s45
      %s48 = ssub.s32 %s35, %s47
      %s49 = ssub.s32 %s36, %s43
      %s50 = sor.u32 %s48, %s49
      %p51 = scmp.eq.s32.totalorder %s50, 0
      %s53 = sadd.s32 %s52, 1
      %s54 = scalar_select %p51, %s52, %s53
      %p57 = pneg %p51
      %p58 = scmp.eq.s32.totalorder %s28, 1
      %p59 = por %p57, %p58
      %p60 = scmp.ne.s32.totalorder %s52, %s55
      %p61 = scmp.eq.s32.totalorder %s28, 0
      %p62 = por %p60, %p61
      %p63 = scmp.ne.s32.totalorder %s52, %s55
      %p64 = scmp.eq.s32.totalorder %s33, 1
      %p65 = por %p63, %p64
      %p66 = scmp.ne.s32.totalorder %s55, %s56
      %p67 = scmp.eq.s32.totalorder %s33, 0
      %p68 = por %p66, %p67
      %p69 = scmp.ne.s32.totalorder %s55, %s56
      %p70 = scmp.eq.s32.totalorder %s34, 1
      %p71 = por %p69, %p70
      %p73 = scmp.ne.s32.totalorder %s56, %s72
      %p74 = scmp.eq.s32.totalorder %s34, 0
      %p75 = por %p73, %p74
      %s76 = ssub.s32 %s35, %s47
      %p77 = scmp.eq.s32.totalorder %s76, 0
      %s79 = sadd.s32 %s78, 1
      %s80 = scalar_select %p77, %s78, %s79
      %p83 = pneg %p77
      %p84 = scmp.eq.s32.totalorder %s28, 1
      %p85 = por %p83, %p84
      %p86 = scmp.ne.s32.totalorder %s78, %s81
      %p87 = scmp.eq.s32.totalorder %s28, 0
      %p88 = por %p86, %p87
      %p89 = scmp.ne.s32.totalorder %s78, %s81
      %p90 = scmp.eq.s32.totalorder %s33, 1
      %p91 = por %p89, %p90
      %p92 = scmp.ne.s32.totalorder %s81, %s82
      %p93 = scmp.eq.s32.totalorder %s33, 0
      %p94 = por %p92, %p93
      %p95 = scmp.ne.s32.totalorder %s81, %s82
      %p96 = scmp.eq.s32.totalorder %s34, 1
      %p97 = por %p95, %p96
      %p99 = scmp.ne.s32.totalorder %s82, %s98
      %p100 = scmp.eq.s32.totalorder %s34, 0
      %p101 = por %p99, %p100
      %s102 = ssub.s32 %s35, %s47
      %p103 = scmp.eq.s32.totalorder %s102, 0
      %s105 = sadd.s32 %s104, 1
      %s106 = scalar_select %p103, %s104, %s105
      %p109 = pneg %p103
      %p110 = scmp.eq.s32.totalorder %s28, 1
      %p111 = por %p109, %p110
      %p112 = scmp.ne.s32.totalorder %s104, %s107
      %p113 = scmp.eq.s32.totalorder %s28, 0
      %p114 = por %p112, %p113
      %p115 = scmp.ne.s32.totalorder %s104, %s107
      %p116 = scmp.eq.s32.totalorder %s33, 1
      %p117 = por %p115, %p116
      %p118 = scmp.ne.s32.totalorder %s107, %s108
      %p119 = scmp.eq.s32.totalorder %s33, 0
      %p120 = por %p118, %p119
      %p121 = scmp.ne.s32.totalorder %s107, %s108
      %p122 = scmp.eq.s32.totalorder %s34, 1
      %p123 = por %p121, %p122
      %p125 = scmp.ne.s32.totalorder %s108, %s124
      %p126 = scmp.eq.s32.totalorder %s34, 0
      %p127 = por %p125, %p126
      %s129 = sadd.s32 %s128, 1
      %p132 = scmp.eq.s32.totalorder %s28, 1
      %p133 = scmp.ne.s32.totalorder %s128, %s130
      %p134 = scmp.eq.s32.totalorder %s28, 0
      %p135 = por %p133, %p134
      %p136 = scmp.ne.s32.totalorder %s128, %s130
      %p137 = scmp.eq.s32.totalorder %s33, 1
      %p138 = por %p136, %p137
      %p139 = scmp.ne.s32.totalorder %s130, %s131
      %p140 = scmp.eq.s32.totalorder %s33, 0
      %p141 = por %p139, %p140
      %p142 = scmp.ne.s32.totalorder %s130, %s131
      %p143 = scmp.eq.s32.totalorder %s34, 1
      %p144 = por %p142, %p143
      %p146 = scmp.ne.s32.totalorder %s131, %s145
      %p147 = scmp.eq.s32.totalorder %s34, 0
      %p148 = por %p146, %p147
      %s150 = sadd.s32 %s149, 1
      %p153 = scmp.eq.s32.totalorder %s28, 1
      %p154 = scmp.ne.s32.totalorder %s149, %s151
      %p155 = scmp.eq.s32.totalorder %s28, 0
      %p156 = por %p154, %p155
      %p157 = scmp.ne.s32.totalorder %s149, %s151
      %p158 = scmp.eq.s32.totalorder %s33, 1
      %p159 = por %p157, %p158
      %p160 = scmp.ne.s32.totalorder %s151, %s152
      %p161 = scmp.eq.s32.totalorder %s33, 0
      %p162 = por %p160, %p161
      %p163 = scmp.ne.s32.totalorder %s151, %s152
      %p164 = scmp.eq.s32.totalorder %s34, 1
      %p165 = por %p163, %p164
      %p167 = scmp.ne.s32.totalorder %s152, %s166
      %p168 = scmp.eq.s32.totalorder %s34, 0
      %p169 = por %p167, %p168
      %s171 = sadd.s32 %s170, 1
      %p174 = scmp.eq.s32.totalorder %s28, 1
      %p175 = scmp.ne.s32.totalorder %s170, %s172
      %p176 = scmp.eq.s32.totalorder %s28, 0
      %p177 = por %p175, %p176
      %p178 = scmp.ne.s32.totalorder %s170, %s172
      %p179 = scmp.eq.s32.totalorder %s33, 1
      %p180 = por %p178, %p179
      %p181 = scmp.ne.s32.totalorder %s172, %s173
      %p182 = scmp.eq.s32.totalorder %s33, 0
      %p183 = por %p181, %p182
      %p184 = scmp.ne.s32.totalorder %s172, %s173
      %p185 = scmp.eq.s32.totalorder %s34, 1
      %p186 = por %p184, %p185
      %p188 = scmp.ne.s32.totalorder %s173, %s187
      %p189 = scmp.eq.s32.totalorder %s34, 0
      %p190 = por %p188, %p189
      %s192 = sadd.s32 %s191, 1
      %p195 = scmp.eq.s32.totalorder %s28, 1
      %p196 = scmp.ne.s32.totalorder %s191, %s193
      %p197 = scmp.eq.s32.totalorder %s28, 0
      %p198 = por %p196, %p197
      %p199 = scmp.ne.s32.totalorder %s191, %s193
      %p200 = scmp.eq.s32.totalorder %s33, 1
      %p201 = por %p199, %p200
      %p202 = scmp.ne.s32.totalorder %s193, %s194
      %p203 = scmp.eq.s32.totalorder %s33, 0
      %p204 = por %p202, %p203
      %p205 = scmp.ne.s32.totalorder %s193, %s194
      %p206 = scmp.eq.s32.totalorder %s34, 1
      %p207 = por %p205, %p206
      %p209 = scmp.ne.s32.totalorder %s194, %s208
      %p210 = scmp.eq.s32.totalorder %s34, 0
      %p211 = por %p209, %p210
      %s213 = sadd.s32 %s212, 1
      %p216 = scmp.eq.s32.totalorder %s28, 1
      %p217 = scmp.ne.s32.totalorder %s212, %s214
      %p218 = scmp.eq.s32.totalorder %s28, 0
      %p219 = por %p217, %p218
      %p220 = scmp.ne.s32.totalorder %s212, %s214
      %p221 = scmp.eq.s32.totalorder %s33, 1
      %p222 = por %p220, %p221
      %p223 = scmp.ne.s32.totalorder %s214, %s215
      %p224 = scmp.eq.s32.totalorder %s33, 0
      %p225 = por %p223, %p224
      %p226 = scmp.ne.s32.totalorder %s214, %s215
      %p227 = scmp.eq.s32.totalorder %s34, 1
      %p228 = por %p226, %p227
      %p230 = scmp.ne.s32.totalorder %s215, %s229
      %p231 = scmp.eq.s32.totalorder %s34, 0
      %p232 = por %p230, %p231
      %s234 = sadd.s32 %s233, 1
      %p237 = scmp.eq.s32.totalorder %s28, 1
      %p238 = scmp.ne.s32.totalorder %s233, %s235
      %p239 = scmp.eq.s32.totalorder %s28, 0
      %p240 = por %p238, %p239
      %p241 = scmp.ne.s32.totalorder %s233, %s235
      %p242 = scmp.eq.s32.totalorder %s33, 1
      %p243 = por %p241, %p242
      %p244 = scmp.ne.s32.totalorder %s235, %s236
      %p245 = scmp.eq.s32.totalorder %s33, 0
      %p246 = por %p244, %p245
      %p247 = scmp.ne.s32.totalorder %s235, %s236
      %p248 = scmp.eq.s32.totalorder %s34, 1
      %p249 = por %p247, %p248
      %p251 = scmp.ne.s32.totalorder %s236, %s250
      %p252 = scmp.eq.s32.totalorder %s34, 0
      %p253 = por %p251, %p252
      %s255 = sadd.s32 %s254, 1
      %p258 = scmp.eq.s32.totalorder %s28, 1
      %p259 = scmp.ne.s32.totalorder %s254, %s256
      %p260 = scmp.eq.s32.totalorder %s28, 0
      %p261 = por %p259, %p260
      %p262 = scmp.ne.s32.totalorder %s254, %s256
      %p263 = scmp.eq.s32.totalorder %s33, 1
      %p264 = por %p262, %p263
      %p265 = scmp.ne.s32.totalorder %s256, %s257
      %p266 = scmp.eq.s32.totalorder %s33, 0
      %p267 = por %p265, %p266
      %p268 = scmp.ne.s32.totalorder %s256, %s257
      %p269 = scmp.eq.s32.totalorder %s34, 1
      %p270 = por %p268, %p269
      %p272 = scmp.ne.s32.totalorder %s257, %s271
      %p273 = scmp.eq.s32.totalorder %s34, 0
      %p274 = por %p272, %p273
      %s276 = sadd.s32 %s275, 1
      %p279 = scmp.eq.s32.totalorder %s28, 1
      %p280 = scmp.ne.s32.totalorder %s275, %s277
      %p281 = scmp.eq.s32.totalorder %s28, 0
      %p282 = por %p280, %p281
      %p283 = scmp.ne.s32.totalorder %s275, %s277
      %p284 = scmp.eq.s32.totalorder %s33, 1
      %p285 = por %p283, %p284
      %p286 = scmp.ne.s32.totalorder %s277, %s278
      %p287 = scmp.eq.s32.totalorder %s33, 0
      %p288 = por %p286, %p287
      %p289 = scmp.ne.s32.totalorder %s277, %s278
      %p290 = scmp.eq.s32.totalorder %s34, 1
      %p291 = por %p289, %p290
      %p293 = scmp.ne.s32.totalorder %s278, %s292
      %p294 = scmp.eq.s32.totalorder %s34, 0
      %p295 = por %p293, %p294
      %s296 = ssub.s32 %s35, %s47
      %s297 = ssub.s32 %s36, %s43
      %s298 = sor.u32 %s296, %s297
      %p299 = scmp.eq.s32.totalorder %s298, 0
      %s301 = sadd.s32 %s300, 1
      %s302 = scalar_select %p299, %s300, %s301
      %p305 = pneg %p299
      %p306 = scmp.eq.s32.totalorder %s28, 1
      %p307 = por %p305, %p306
      %p308 = scmp.ne.s32.totalorder %s300, %s303
      %p309 = scmp.eq.s32.totalorder %s28, 0
      %p310 = por %p308, %p309
      %p311 = scmp.ne.s32.totalorder %s300, %s303
      %p312 = scmp.eq.s32.totalorder %s33, 1
      %p313 = por %p311, %p312
      %p314 = scmp.ne.s32.totalorder %s303, %s304
      %p315 = scmp.eq.s32.totalorder %s33, 0
      %p316 = por %p314, %p315
      %p317 = scmp.ne.s32.totalorder %s303, %s304
      %p318 = scmp.eq.s32.totalorder %s34, 1
      %p319 = por %p317, %p318
      %p321 = scmp.ne.s32.totalorder %s304, %s320
      %p322 = scmp.eq.s32.totalorder %s34, 0
      %p323 = por %p321, %p322
      %p324 = scmp.le.s32.totalorder 1, %s28
      %p325 = scmp.lt.s32.totalorder %s28, 3
      %p326 = pnand %p324, %p325
      %p327 = pneg %p326
      // Predicated region
      $region9: #{tpu_custom_call.1} parent=5 // pred_check
        _
      $region10: #{tpu_custom_call.1} parent=5 // pred_check_branch
        %329 = sbr.rel (%p326) target = $region12
      $region11: #{tpu_custom_call.1} parent=5 // pred_region
        %s330 = ssub.s32 %s28, 1
        // Predicated region
        $region13: #{tpu_custom_call.1} parent=11 // pred_check
          %p331 = pneg %p141
        $region14: #{tpu_custom_call.1} parent=11 // pred_check_branch
          %333 = sbr.rel (%p331) target = $region16
        $region15: #{tpu_custom_call.1} parent=11 // pred_region
          %335 = vsyncadd [#allocation12], 0
          %s336 = sshll.u32 %s3, 4
          %s337 = int_to_ptr.hbm [resolvable:$true] %s336
          %s338 = sshll.u32 [#allocation11], 4
          %s339 = int_to_ptr.vmem [resolvable:$true] %s338
          %344 = dma.hbm_to_vmem [thread:$0]  %s337, 512, %s339, [#allocation12], 128, 128, 8
        $region16: #{tpu_custom_call.1} parent=11 // pred_fallthru
          _
        // Predicated region
        $region17: #{tpu_custom_call.1} parent=11 // pred_check
          %p345 = pneg %p162
        $region18: #{tpu_custom_call.1} parent=11 // pred_check_branch
          %347 = sbr.rel (%p345) target = $region20
        $region19: #{tpu_custom_call.1} parent=11 // pred_region
          _
        $region20: #{tpu_custom_call.1} parent=11 // pred_fallthru
          _
        // Predicated region
        $region21: #{tpu_custom_call.1} parent=11 // pred_check
          %p348 = pneg %p183
        $region22: #{tpu_custom_call.1} parent=11 // pred_check_branch
          %350 = sbr.rel (%p348) target = $region24
        $region23: #{tpu_custom_call.1} parent=11 // pred_region
          %352 = vsyncadd [#allocation12], 0
          %s353 = sshll.u32 %s5, 4
          %s354 = int_to_ptr.hbm [resolvable:$true] %s353
          %s355 = sshll.u32 [#allocation13], 4
          %s356 = int_to_ptr.vmem [resolvable:$true] %s355
          %361 = dma.hbm_to_vmem [thread:$0]  %s354, 512, %s356, [#allocation12], 128, 128, 8
        $region24: #{tpu_custom_call.1} parent=11 // pred_fallthru
          _
        // Predicated region
        $region25: #{tpu_custom_call.1} parent=11 // pred_check
          %p362 = pneg %p204
        $region26: #{tpu_custom_call.1} parent=11 // pred_check_branch
          %364 = sbr.rel (%p362) target = $region28
        $region27: #{tpu_custom_call.1} parent=11 // pred_region
          _
        $region28: #{tpu_custom_call.1} parent=11 // pred_fallthru
          _
        // Predicated region
        $region29: #{tpu_custom_call.1} parent=11 // pred_check
          %p365 = pneg %p225
        $region30: #{tpu_custom_call.1} parent=11 // pred_check_branch
          %367 = sbr.rel (%p365) target = $region32
        $region31: #{tpu_custom_call.1} parent=11 // pred_region
          %369 = vsyncadd [#allocation15], 0
          %s370 = sshll.u32 %s7, 4
          %s371 = int_to_ptr.hbm [resolvable:$true] %s370
          %s372 = sshll.u32 [#allocation14], 4
          %s373 = int_to_ptr.vmem [resolvable:$true] %s372
          %378 = dma.hbm_to_vmem [thread:$0]  %s371, 512, %s373, [#allocation15], 128, 128, 8
        $region32: #{tpu_custom_call.1} parent=11 // pred_fallthru
          _
        // Predicated region
        $region33: #{tpu_custom_call.1} parent=11 // pred_check
          %p379 = pneg %p246
        $region34: #{tpu_custom_call.1} parent=11 // pred_check_branch
          %381 = sbr.rel (%p379) target = $region36
        $region35: #{tpu_custom_call.1} parent=11 // pred_region
          _
        $region36: #{tpu_custom_call.1} parent=11 // pred_fallthru
          _
        // Predicated region
        $region37: #{tpu_custom_call.1} parent=11 // pred_check
          %p382 = pneg %p267
        $region38: #{tpu_custom_call.1} parent=11 // pred_check_branch
          %384 = sbr.rel (%p382) target = $region40
        $region39: #{tpu_custom_call.1} parent=11 // pred_region
          %386 = vsyncadd [#allocation15], 0
          %s387 = sshll.u32 %s9, 4
          %s388 = int_to_ptr.hbm [resolvable:$true] %s387
          %s389 = sshll.u32 [#allocation16], 4
          %s390 = int_to_ptr.vmem [resolvable:$true] %s389
          %395 = dma.hbm_to_vmem [thread:$0]  %s388, 512, %s390, [#allocation15], 128, 128, 8
        $region40: #{tpu_custom_call.1} parent=11 // pred_fallthru
          _
        // Predicated region
        $region41: #{tpu_custom_call.1} parent=11 // pred_check
          %p396 = pneg %p288
        $region42: #{tpu_custom_call.1} parent=11 // pred_check_branch
          %398 = sbr.rel (%p396) target = $region44
        $region43: #{tpu_custom_call.1} parent=11 // pred_region
          _
        $region44: #{tpu_custom_call.1} parent=11 // pred_fallthru
          _
      $region12: #{tpu_custom_call.1} parent=5 // pred_fallthru
        _
      %p399 = scmp.lt.s32.totalorder %s28, 2
      // Predicated region
      $region45: #{tpu_custom_call.1} parent=5 // pred_check
        %p400 = pneg %p399
      $region46: #{tpu_custom_call.1} parent=5 // pred_check_branch
        %402 = sbr.rel (%p400) target = $region48
      $region47: #{tpu_custom_call.1} parent=5 // pred_region
        // Predicated region
        $region49: #{tpu_custom_call.1} parent=47 // pred_check
          %p403 = pneg %p62
        $region50: #{tpu_custom_call.1} parent=47 // pred_check_branch
          %405 = sbr.rel (%p403) target = $region52
        $region51: #{tpu_custom_call.1} parent=47 // pred_region
          %s406 = sand.u32 %s52, 1
          %s407 = scalar_lea.sflag [#allocation6], %s406
          %s408 = sand.u32 %s52, 1
          %s409 = smul.addr %s408, 8
          %s410 = scalar_lea.vmem [#allocation5], %s409
          %412 = vsyncadd %s407, 0
          %s413 = sadd.s32 %s36, %s35
          %s414 = smul.addr %s413, 8
          %s415 = scalar_lea.hbm %s0, %s414
          %s417 = sshll.u32 %s415, 4
          %s418 = int_to_ptr.hbm [resolvable:$true] %s417
          %s419 = sshll.u32 %s410, 4
          %s420 = int_to_ptr.vmem [resolvable:$true] %s419
          %422 = dma.hbm_to_vmem [thread:$0]  %s418, 128, %s420, %s407
        $region52: #{tpu_custom_call.1} parent=47 // pred_fallthru
          _
        // Predicated region
        $region53: #{tpu_custom_call.1} parent=47 // pred_check
          %p423 = pneg %p88
        $region54: #{tpu_custom_call.1} parent=47 // pred_check_branch
          %425 = sbr.rel (%p423) target = $region56
        $region55: #{tpu_custom_call.1} parent=47 // pred_region
          %s426 = sand.u32 %s28, 1
          %s427 = scalar_lea.sflag [#allocation9], %s426
          %s428 = sand.u32 %s78, 1
          %s429 = smul.addr %s428, 8
          %s430 = scalar_lea.vmem [#allocation8], %s429
          %432 = vsyncadd %s427, 0
          %s433 = smul.addr %s35, 8
          %s434 = scalar_lea.hbm %s1, %s433
          %s436 = sshll.u32 %s434, 4
          %s437 = int_to_ptr.hbm [resolvable:$true] %s436
          %s438 = sshll.u32 %s430, 4
          %s439 = int_to_ptr.vmem [resolvable:$true] %s438
          %441 = dma.hbm_to_vmem [thread:$0]  %s437, 128, %s439, %s427
        $region56: #{tpu_custom_call.1} parent=47 // pred_fallthru
          _
        // Predicated region
        $region57: #{tpu_custom_call.1} parent=47 // pred_check
          %p442 = pneg %p114
        $region58: #{tpu_custom_call.1} parent=47 // pred_check_branch
          %444 = sbr.rel (%p442) target = $region60
        $region59: #{tpu_custom_call.1} parent=47 // pred_region
          %s445 = sand.u32 %s28, 1
          %s446 = scalar_lea.sflag [#allocation9], %s445
          %s447 = sand.u32 %s104, 1
          %s448 = smul.addr %s447, 8
          %s449 = scalar_lea.vmem [#allocation10], %s448
          %451 = vsyncadd %s446, 0
          %s452 = smul.addr %s35, 8
          %s453 = scalar_lea.hbm %s2, %s452
          %s455 = sshll.u32 %s453, 4
          %s456 = int_to_ptr.hbm [resolvable:$true] %s455
          %s457 = sshll.u32 %s449, 4
          %s458 = int_to_ptr.vmem [resolvable:$true] %s457
          %460 = dma.hbm_to_vmem [thread:$0]  %s456, 128, %s458, %s446
        $region60: #{tpu_custom_call.1} parent=47 // pred_fallthru
          _
      $region48: #{tpu_custom_call.1} parent=5 // pred_fallthru
        _
      %p461 = scmp.le.s32.totalorder 1, %s28
      %p462 = scmp.lt.s32.totalorder %s28, 3
      %p463 = pnand %p461, %p462
      %p464 = pneg %p463
      // Predicated region
      $region61: #{tpu_custom_call.1} parent=5 // pred_check
        _
      $region62: #{tpu_custom_call.1} parent=5 // pred_check_branch
        %466 = sbr.rel (%p463) target = $region64
      $region63: #{tpu_custom_call.1} parent=5 // pred_region
        %s467 = ssub.s32 %s28, 1
        %s468 = sand.u32 %s55, 1
        %s469 = scalar_lea.sflag [#allocation6], %s468
        %s470 = sand.u32 %s55, 1
        %s471 = smul.addr %s470, 8
        %s472 = scalar_lea.vmem [#allocation5], %s471
        // Predicated region
        $region65: #{tpu_custom_call.1} parent=63 // pred_check
          %p473 = pneg %p68
        $region66: #{tpu_custom_call.1} parent=63 // pred_check_branch
          %475 = sbr.rel (%p473) target = $region68
        $region67: #{tpu_custom_call.1} parent=63 // pred_region
          %477 = dma.done %s469, 128
        $region68: #{tpu_custom_call.1} parent=63 // pred_fallthru
          _
        %s478 = sand.u32 %s33, 1
        %s479 = scalar_lea.sflag [#allocation9], %s478
        %s480 = sand.u32 %s81, 1
        %s481 = smul.addr %s480, 8
        %s482 = scalar_lea.vmem [#allocation8], %s481
        // Predicated region
        $region69: #{tpu_custom_call.1} parent=63 // pred_check
          %p483 = pneg %p94
        $region70: #{tpu_custom_call.1} parent=63 // pred_check_branch
          %485 = sbr.rel (%p483) target = $region72
        $region71: #{tpu_custom_call.1} parent=63 // pred_region
          %487 = dma.done %s479, 128
        $region72: #{tpu_custom_call.1} parent=63 // pred_fallthru
          _
        %s488 = sand.u32 %s33, 1
        %s489 = scalar_lea.sflag [#allocation9], %s488
        %s490 = sand.u32 %s107, 1
        %s491 = smul.addr %s490, 8
        %s492 = scalar_lea.vmem [#allocation10], %s491
        // Predicated region
        $region73: #{tpu_custom_call.1} parent=63 // pred_check
          %p493 = pneg %p120
        $region74: #{tpu_custom_call.1} parent=63 // pred_check_branch
          %495 = sbr.rel (%p493) target = $region76
        $region75: #{tpu_custom_call.1} parent=63 // pred_region
          %497 = dma.done %s489, 128
        $region76: #{tpu_custom_call.1} parent=63 // pred_fallthru
          _
        // Predicated region
        $region77: #{tpu_custom_call.1} parent=63 // pred_check
          %p498 = pneg %p141
        $region78: #{tpu_custom_call.1} parent=63 // pred_check_branch
          %500 = sbr.rel (%p498) target = $region80
        $region79: #{tpu_custom_call.1} parent=63 // pred_region
          %502 = dma.done [#allocation12], 512
        $region80: #{tpu_custom_call.1} parent=63 // pred_fallthru
          _
        // Predicated region
        $region81: #{tpu_custom_call.1} parent=63 // pred_check
          %p503 = pneg %p183
        $region82: #{tpu_custom_call.1} parent=63 // pred_check_branch
          %505 = sbr.rel (%p503) target = $region84
        $region83: #{tpu_custom_call.1} parent=63 // pred_region
          %507 = dma.done [#allocation12], 512
        $region84: #{tpu_custom_call.1} parent=63 // pred_fallthru
          _
        // Predicated region
        $region85: #{tpu_custom_call.1} parent=63 // pred_check
          %p508 = pneg %p225
        $region86: #{tpu_custom_call.1} parent=63 // pred_check_branch
          %510 = sbr.rel (%p508) target = $region88
        $region87: #{tpu_custom_call.1} parent=63 // pred_region
          %512 = dma.done [#allocation15], 512
        $region88: #{tpu_custom_call.1} parent=63 // pred_fallthru
          _
        // Predicated region
        $region89: #{tpu_custom_call.1} parent=63 // pred_check
          %p513 = pneg %p267
        $region90: #{tpu_custom_call.1} parent=63 // pred_check_branch
          %515 = sbr.rel (%p513) target = $region92
        $region91: #{tpu_custom_call.1} parent=63 // pred_region
          %517 = dma.done [#allocation15], 512
        $region92: #{tpu_custom_call.1} parent=63 // pred_fallthru
          _
        %s518 = sand.u32 %s55, 1
        %s519 = scalar_lea.sflag [#allocation6], %s518
        %s520 = sand.u32 %s55, 1
        %s521 = smul.addr %s520, 8
        %s522 = scalar_lea.vmem [#allocation5], %s521
        %p523 = pneg %p68
        %p524 = pneg %p65
        %s525 = sand.u32 %s33, 1
        %s526 = scalar_lea.sflag [#allocation9], %s525
        %s527 = sand.u32 %s81, 1
        %s528 = smul.addr %s527, 8
        %s529 = scalar_lea.vmem [#allocation8], %s528
        %p530 = pneg %p94
        %p531 = pneg %p91
        %s532 = sand.u32 %s33, 1
        %s533 = scalar_lea.sflag [#allocation9], %s532
        %s534 = sand.u32 %s107, 1
        %s535 = smul.addr %s534, 8
        %s536 = scalar_lea.vmem [#allocation10], %s535
        %p537 = pneg %p120
        %p538 = pneg %p117
        %p539 = pneg %p141
        %p540 = pneg %p138
        %p541 = pneg %p162
        %p542 = pneg %p159
        %p543 = pneg %p183
        %p544 = pneg %p180
        %p545 = pneg %p204
        %p546 = pneg %p201
        %p547 = pneg %p225
        %p548 = pneg %p222
        %p549 = pneg %p246
        %p550 = pneg %p243
        %p551 = pneg %p267
        %p552 = pneg %p264
        %p553 = pneg %p288
        %p554 = pneg %p285
        %p555 = pneg %p316
        %p556 = pneg %p313
        %s557 = sand.u32 %s303, 1
        %s558 = scalar_lea.sflag [#allocation7], %s557
        %s559 = sand.u32 %s303, 1
        %s560 = smul.addr %s559, 8
        %s561 = scalar_lea.vmem [#allocation17], %s560
        %p562 = scmp.eq.s32.totalorder %s38, 0
        // Predicated region
        $region93: #{tpu_custom_call.1} parent=63 // pred_check
          %p563 = pneg %p562
        $region94: #{tpu_custom_call.1} parent=63 // pred_check_branch
          %565 = sbr.rel (%p563) target = $region96
        $region95: #{tpu_custom_call.1} parent=63 // pred_region
          %v566 = vld [vmem:[%s482] sm:$0xff]
          %v567 = vld [vmem:[%s492] sm:$0xff]
          %v568 = vld [vmem:[#allocation13] sm:$0xff]
          %v569 = vld [vmem:[#allocation13 + $0x8] sm:$0xff]
          %v570 = vld [vmem:[#allocation13 + $0x10] sm:$0xff]
          %v571 = vld [vmem:[#allocation13 + $0x18] sm:$0xff]
          %v572 = vld [vmem:[%s6] sm:$0x1]
          %v574 = vperm.slane %v572, 0
          %vm576 = vcmask 261120
          %v578 = vsel %vm576, %v566, 0
          %580 = vmatpush.msra.mxu0 0.0
          %581 = vmatpush.msra.mxu0 0.0
          %582 = vmatpush.msra.mxu0 0.0
          %583 = vmatpush.msra.mxu0 0.0
          %584 = vmatpush.msra.mxu0 0.0
          %585 = vmatpush.msra.mxu0 0.0
          %586 = vmatpush.msra.mxu0 0.0
          %587 = vmatpush.msra.mxu0 0.0
          %588 = vmatpush.msra.mxu0 0.0
          %589 = vmatpush.msra.mxu0 0.0
          %590 = vmatpush.msra.mxu0 0.0
          %591 = vmatpush.msra.mxu0 0.0
          %592 = vmatpush.msra.mxu0 %v571
          %593 = vmatpush.msra.mxu0 %v570
          %594 = vmatpush.msra.mxu0 %v569
          %595 = vmatpush.msra.mxu0 %v568
          %596 = vmatmul.f32.gmra.mxu0 %v578
          %v597 = vpop.f32.mrf.mxu0
          %v598 = vadd.f32 %v574, %v597
          %599 = vdwg.mxu0
          %600 = vst.msk [vmem:[#allocation2] sm:$0xff] %vm576, %v598
          %v601 = vld [vmem:[#allocation14] sm:$0xff]
          %v602 = vld [vmem:[#allocation14 + $0x8] sm:$0xff]
          %v603 = vld [vmem:[#allocation14 + $0x10] sm:$0xff]
          %v604 = vld [vmem:[#allocation14 + $0x18] sm:$0xff]
          %v605 = vld [vmem:[%s8] sm:$0x1]
          %v607 = vperm.slane %v605, 0
          %v610 = vsel %vm576, %v567, 0
          %612 = vmatpush.msra.mxu0 0.0
          %613 = vmatpush.msra.mxu0 0.0
          %614 = vmatpush.msra.mxu0 0.0
          %615 = vmatpush.msra.mxu0 0.0
          %616 = vmatpush.msra.mxu0 0.0
          %617 = vmatpush.msra.mxu0 0.0
          %618 = vmatpush.msra.mxu0 0.0
          %619 = vmatpush.msra.mxu0 0.0
          %620 = vmatpush.msra.mxu0 0.0
          %621 = vmatpush.msra.mxu0 0.0
          %622 = vmatpush.msra.mxu0 0.0
          %623 = vmatpush.msra.mxu0 0.0
          %624 = vmatpush.msra.mxu0 %v604
          %625 = vmatpush.msra.mxu0 %v603
          %626 = vmatpush.msra.mxu0 %v602
          %627 = vmatpush.msra.mxu0 %v601
          %628 = vmatmul.f32.gmra.mxu0 %v610
          %v629 = vpop.f32.mrf.mxu0
          %v630 = vadd.f32 %v607, %v629
          %631 = vdwg.mxu0
          %632 = vst.msk [vmem:[#allocation3] sm:$0xff] %vm576, %v630
        $region96: #{tpu_custom_call.1} parent=63 // pred_fallthru
          _
        %v633 = vld [vmem:[%s472] sm:$0xff]
        %v634 = vld [vmem:[#allocation11] sm:$0xff]
        %v635 = vld [vmem:[#allocation11 + $0x8] sm:$0xff]
        %v636 = vld [vmem:[#allocation11 + $0x10] sm:$0xff]
        %v637 = vld [vmem:[#allocation11 + $0x18] sm:$0xff]
        %v638 = vld [vmem:[%s4] sm:$0x1]
        %v640 = vperm.slane %v638, 0
        %vm642 = vcmask 261120
        %v644 = vsel %vm642, %v633, 0
        %646 = vmatpush.msra.mxu0 0.0
        %647 = vmatpush.msra.mxu0 0.0
        %648 = vmatpush.msra.mxu0 0.0
        %649 = vmatpush.msra.mxu0 0.0
        %650 = vmatpush.msra.mxu0 0.0
        %651 = vmatpush.msra.mxu0 0.0
        %652 = vmatpush.msra.mxu0 0.0
        %653 = vmatpush.msra.mxu0 0.0
        %654 = vmatpush.msra.mxu0 0.0
        %655 = vmatpush.msra.mxu0 0.0
        %656 = vmatpush.msra.mxu0 0.0
        %657 = vmatpush.msra.mxu0 0.0
        %658 = vmatpush.msra.mxu0 %v637
        %659 = vmatpush.msra.mxu0 %v636
        %660 = vmatpush.msra.mxu0 %v635
        %661 = vmatpush.msra.mxu0 %v634
        %662 = vmatmul.f32.gmra.mxu0 %v644
        %v663 = vpop.f32.mrf.mxu0
        %v664 = vadd.f32 %v640, %v663
        %665 = vdwg.mxu0
        %v666 = vld [vmem:[#allocation2] sm:$0xff]
        %v667 = vld [vmem:[#allocation3] sm:$0xff]
        %vm668 = vcmask 64512
        %v670 = vsel %vm668, %v664, 0
        %v673 = vsel %vm668, %v666, 0
        %675 = vmatpush.xpose.msra.mxu0 0.0
        %676 = vmatpush.xpose.msra.mxu0 0.0
        %677 = vmatpush.xpose.msra.mxu0 0.0
        %678 = vmatpush.xpose.msra.mxu0 0.0
        %679 = vmatpush.xpose.msra.mxu0 0.0
        %680 = vmatpush.xpose.msra.mxu0 0.0
        %681 = vmatpush.xpose.msra.mxu0 0.0
        %682 = vmatpush.xpose.msra.mxu0 0.0
        %683 = vmatpush.xpose.msra.mxu0 0.0
        %684 = vmatpush.xpose.msra.mxu0 0.0
        %685 = vmatpush.xpose.msra.mxu0 0.0
        %686 = vmatpush.xpose.msra.mxu0 0.0
        %687 = vmatpush.xpose.msra.mxu0 0.0
        %688 = vmatpush.xpose.msra.mxu0 0.0
        %689 = vmatpush.xpose.msra.mxu0 0.0
        %690 = vmatpush.xpose.msra.mxu0 %v673
        %691 = vmatmul.f32.gmra.mxu0 %v670
        %v692 = vpop.f32.mrf.mxu0
        %v693 = vadd.f32 0.0, %v692
        %694 = vdwg.mxu0
        %v695 = vsel %vm668, %v693, -inf
        %696 = vmax.xlane.f32.xlu0 %v695
        %v697 = vpop.xlane.xlu0 %696
        %v698 = vsub.f32 %v693, %v697
        %v699 = vmul.f32 %v698, 1.442695
        %v700 = vpow.pop %v699
        %v701 = vsel %vm668, %v700, 0.0
        %702 = vadd.xlane.f32.xlu0 %v701
        %v703 = vpop.xlane.xlu0 %702
        %v705 = vsel %vm668, %v700, 0
        %707 = vmatpush.msra.mxu0 0.0
        %708 = vmatpush.msra.mxu0 0.0
        %709 = vmatpush.msra.mxu0 0.0
        %710 = vmatpush.msra.mxu0 0.0
        %711 = vmatpush.msra.mxu0 0.0
        %712 = vmatpush.msra.mxu0 0.0
        %713 = vmatpush.msra.mxu0 0.0
        %714 = vmatpush.msra.mxu0 0.0
        %715 = vmatpush.msra.mxu0 0.0
        %716 = vmatpush.msra.mxu0 0.0
        %717 = vmatpush.msra.mxu0 0.0
        %718 = vmatpush.msra.mxu0 0.0
        %719 = vmatpush.msra.mxu0 0.0
        %720 = vmatpush.msra.mxu0 0.0
        %721 = vmatpush.msra.mxu0 0.0
        %722 = vmatpush.msra.mxu0 %v667
        %723 = vmatmul.f32.gmra.mxu0 %v705
        %v724 = vpop.f32.mrf.mxu0
        %v725 = vadd.f32 0.0, %v724
        %726 = vdwg.mxu0
        %v727 = vrcp.pop %v703
        %v728 = vmul.f32 %v703, %v727
        %v729 = vsub.f32 1.0, %v728
        %v730 = vmul.f32 %v727, %v729
        %v731 = vadd.f32 %v727, %v730
        %vm732 = vweird.f32 %v703
        %vm733 = vweird.f32 %v727
        %vm734 = vmor %vm732, %vm733
        %v735 = vsel %vm734, %v727, %v731
        %v736 = vand.u32 2147483647, %v703
        %vm737 = vcmp.eq.f32.partialorder %v736, 8.507059e+37
        %v738 = vand.u32 %v703, 2147483648
        %v739 = vor.u32 1.1754944e-38, %v738
        %v740 = vsel %vm737, %v739, %v735
        %v741 = vmul.f32 %v725, %v740
        %742 = vst.msk [vmem:[#allocation4] sm:$0xff] %vm668, %v741
        %743 = vrot.lane.b32.xlu0 %v664, 120
        %v744 = vpop.permute.xlu0 %743
        %745 = vrot.lane.b32.xlu0 %v666, 120
        %v746 = vpop.permute.xlu0 %745
        %v747 = vsel %vm668, %v744, 0
        %v749 = vsel %vm668, %v746, 0
        %751 = vmatpush.xpose.msra.mxu0 0.0
        %752 = vmatpush.xpose.msra.mxu0 0.0
        %753 = vmatpush.xpose.msra.mxu0 0.0
        %754 = vmatpush.xpose.msra.mxu0 0.0
        %755 = vmatpush.xpose.msra.mxu0 0.0
        %756 = vmatpush.xpose.msra.mxu0 0.0
        %757 = vmatpush.xpose.msra.mxu0 0.0
        %758 = vmatpush.xpose.msra.mxu0 0.0
        %759 = vmatpush.xpose.msra.mxu0 0.0
        %760 = vmatpush.xpose.msra.mxu0 0.0
        %761 = vmatpush.xpose.msra.mxu0 0.0
        %762 = vmatpush.xpose.msra.mxu0 0.0
        %763 = vmatpush.xpose.msra.mxu0 0.0
        %764 = vmatpush.xpose.msra.mxu0 0.0
        %765 = vmatpush.xpose.msra.mxu0 0.0
        %766 = vmatpush.xpose.msra.mxu0 %v749
        %767 = vmatmul.f32.gmra.mxu0 %v747
        %v768 = vpop.f32.mrf.mxu0
        %v769 = vadd.f32 0.0, %v768
        %770 = vdwg.mxu0
        %v771 = vsel %vm668, %v769, -inf
        %772 = vmax.xlane.f32.xlu0 %v771
        %v773 = vpop.xlane.xlu0 %772
        %v774 = vsub.f32 %v769, %v773
        %v775 = vmul.f32 %v774, 1.442695
        %v776 = vpow.pop %v775
        %v777 = vsel %vm668, %v776, 0.0
        %778 = vadd.xlane.f32.xlu0 %v777
        %v779 = vpop.xlane.xlu0 %778
        %781 = vrot.lane.b32.xlu0 %v667, 120
        %v782 = vpop.permute.xlu0 %781
        %v785 = vsel %vm668, %v776, 0
        %787 = vmatpush.msra.mxu0 0.0
        %788 = vmatpush.msra.mxu0 0.0
        %789 = vmatpush.msra.mxu0 0.0
        %790 = vmatpush.msra.mxu0 0.0
        %791 = vmatpush.msra.mxu0 0.0
        %792 = vmatpush.msra.mxu0 0.0
        %793 = vmatpush.msra.mxu0 0.0
        %794 = vmatpush.msra.mxu0 0.0
        %795 = vmatpush.msra.mxu0 0.0
        %796 = vmatpush.msra.mxu0 0.0
        %797 = vmatpush.msra.mxu0 0.0
        %798 = vmatpush.msra.mxu0 0.0
        %799 = vmatpush.msra.mxu0 0.0
        %800 = vmatpush.msra.mxu0 0.0
        %801 = vmatpush.msra.mxu0 0.0
        %802 = vmatpush.msra.mxu0 %v782
        %803 = vmatmul.f32.gmra.mxu0 %v785
        %v804 = vpop.f32.mrf.mxu0
        %v805 = vadd.f32 0.0, %v804
        %806 = vdwg.mxu0
        %v807 = vrcp.pop %v779
        %v808 = vmul.f32 %v779, %v807
        %v809 = vsub.f32 1.0, %v808
        %v810 = vmul.f32 %v807, %v809
        %v811 = vadd.f32 %v807, %v810
        %vm812 = vweird.f32 %v779
        %vm813 = vweird.f32 %v807
        %vm814 = vmor %vm812, %vm813
        %v815 = vsel %vm814, %v807, %v811
        %v816 = vand.u32 2147483647, %v779
        %vm817 = vcmp.eq.f32.partialorder %v816, 8.507059e+37
        %v818 = vand.u32 %v779, 2147483648
        %v819 = vor.u32 1.1754944e-38, %v818
        %v820 = vsel %vm817, %v819, %v815
        %v821 = vmul.f32 %v805, %v820
        %823 = vrot.lane.b32.xlu0 %v821, 8
        %v824 = vpop.permute.xlu0 %823
        %vm826 = vcmask 130112
        %827 = vst.msk [vmem:[#allocation4] sm:$0xff] %vm826, %v824
        %828 = vrot.lane.b32.xlu0 %v664, 112
        %v829 = vpop.permute.xlu0 %828
        %830 = vrot.lane.b32.xlu0 %v666, 112
        %v831 = vpop.permute.xlu0 %830
        %v832 = vsel %vm668, %v829, 0
        %v834 = vsel %vm668, %v831, 0
        %836 = vmatpush.xpose.msra.mxu0 0.0
        %837 = vmatpush.xpose.msra.mxu0 0.0
        %838 = vmatpush.xpose.msra.mxu0 0.0
        %839 = vmatpush.xpose.msra.mxu0 0.0
        %840 = vmatpush.xpose.msra.mxu0 0.0
        %841 = vmatpush.xpose.msra.mxu0 0.0
        %842 = vmatpush.xpose.msra.mxu0 0.0
        %843 = vmatpush.xpose.msra.mxu0 0.0
        %844 = vmatpush.xpose.msra.mxu0 0.0
        %845 = vmatpush.xpose.msra.mxu0 0.0
        %846 = vmatpush.xpose.msra.mxu0 0.0
        %847 = vmatpush.xpose.msra.mxu0 0.0
        %848 = vmatpush.xpose.msra.mxu0 0.0
        %849 = vmatpush.xpose.msra.mxu0 0.0
        %850 = vmatpush.xpose.msra.mxu0 0.0
        %851 = vmatpush.xpose.msra.mxu0 %v834
        %852 = vmatmul.f32.gmra.mxu0 %v832
        %v853 = vpop.f32.mrf.mxu0
        %v854 = vadd.f32 0.0, %v853
        %855 = vdwg.mxu0
        %v856 = vsel %vm668, %v854, -inf
        %857 = vmax.xlane.f32.xlu0 %v856
        %v858 = vpop.xlane.xlu0 %857
        %v859 = vsub.f32 %v854, %v858
        %v860 = vmul.f32 %v859, 1.442695
        %v861 = vpow.pop %v860
        %v862 = vsel %vm668, %v861, 0.0
        %863 = vadd.xlane.f32.xlu0 %v862
        %v864 = vpop.xlane.xlu0 %863
        %865 = vrot.lane.b32.xlu0 %v667, 112
        %v866 = vpop.permute.xlu0 %865
        %v869 = vsel %vm668, %v861, 0
        %871 = vmatpush.msra.mxu0 0.0
        %872 = vmatpush.msra.mxu0 0.0
        %873 = vmatpush.msra.mxu0 0.0
        %874 = vmatpush.msra.mxu0 0.0
        %875 = vmatpush.msra.mxu0 0.0
        %876 = vmatpush.msra.mxu0 0.0
        %877 = vmatpush.msra.mxu0 0.0
        %878 = vmatpush.msra.mxu0 0.0
        %879 = vmatpush.msra.mxu0 0.0
        %880 = vmatpush.msra.mxu0 0.0
        %881 = vmatpush.msra.mxu0 0.0
        %882 = vmatpush.msra.mxu0 0.0
        %883 = vmatpush.msra.mxu0 0.0
        %884 = vmatpush.msra.mxu0 0.0
        %885 = vmatpush.msra.mxu0 0.0
        %886 = vmatpush.msra.mxu0 %v866
        %887 = vmatmul.f32.gmra.mxu0 %v869
        %v888 = vpop.f32.mrf.mxu0
        %v889 = vadd.f32 0.0, %v888
        %890 = vdwg.mxu0
        %v891 = vrcp.pop %v864
        %v892 = vmul.f32 %v864, %v891
        %v893 = vsub.f32 1.0, %v892
        %v894 = vmul.f32 %v891, %v893
        %v895 = vadd.f32 %v891, %v894
        %vm896 = vweird.f32 %v864
        %vm897 = vweird.f32 %v891
        %vm898 = vmor %vm896, %vm897
        %v899 = vsel %vm898, %v891, %v895
        %v900 = vand.u32 2147483647, %v864
        %vm901 = vcmp.eq.f32.partialorder %v900, 8.507059e+37
        %v902 = vand.u32 %v864, 2147483648
        %v903 = vor.u32 1.1754944e-38, %v902
        %v904 = vsel %vm901, %v903, %v899
        %v905 = vmul.f32 %v889, %v904
        %907 = vrot.lane.b32.xlu0 %v905, 16
        %v908 = vpop.permute.xlu0 %907
        %vm910 = vcmask 195712
        %911 = vst.msk [vmem:[#allocation4] sm:$0xff] %vm910, %v908
        %912 = vrot.lane.b32.xlu0 %v664, 104
        %v913 = vpop.permute.xlu0 %912
        %914 = vrot.lane.b32.xlu0 %v666, 104
        %v915 = vpop.permute.xlu0 %914
        %v916 = vsel %vm668, %v913, 0
        %v918 = vsel %vm668, %v915, 0
        %920 = vmatpush.xpose.msra.mxu0 0.0
        %921 = vmatpush.xpose.msra.mxu0 0.0
        %922 = vmatpush.xpose.msra.mxu0 0.0
        %923 = vmatpush.xpose.msra.mxu0 0.0
        %924 = vmatpush.xpose.msra.mxu0 0.0
        %925 = vmatpush.xpose.msra.mxu0 0.0
        %926 = vmatpush.xpose.msra.mxu0 0.0
        %927 = vmatpush.xpose.msra.mxu0 0.0
        %928 = vmatpush.xpose.msra.mxu0 0.0
        %929 = vmatpush.xpose.msra.mxu0 0.0
        %930 = vmatpush.xpose.msra.mxu0 0.0
        %931 = vmatpush.xpose.msra.mxu0 0.0
        %932 = vmatpush.xpose.msra.mxu0 0.0
        %933 = vmatpush.xpose.msra.mxu0 0.0
        %934 = vmatpush.xpose.msra.mxu0 0.0
        %935 = vmatpush.xpose.msra.mxu0 %v918
        %936 = vmatmul.f32.gmra.mxu0 %v916
        %v937 = vpop.f32.mrf.mxu0
        %v938 = vadd.f32 0.0, %v937
        %939 = vdwg.mxu0
        %v940 = vsel %vm668, %v938, -inf
        %941 = vmax.xlane.f32.xlu0 %v940
        %v942 = vpop.xlane.xlu0 %941
        %v943 = vsub.f32 %v938, %v942
        %v944 = vmul.f32 %v943, 1.442695
        %v945 = vpow.pop %v944
        %v946 = vsel %vm668, %v945, 0.0
        %947 = vadd.xlane.f32.xlu0 %v946
        %v948 = vpop.xlane.xlu0 %947
        %949 = vrot.lane.b32.xlu0 %v667, 104
        %v950 = vpop.permute.xlu0 %949
        %v953 = vsel %vm668, %v945, 0
        %955 = vmatpush.msra.mxu0 0.0
        %956 = vmatpush.msra.mxu0 0.0
        %957 = vmatpush.msra.mxu0 0.0
        %958 = vmatpush.msra.mxu0 0.0
        %959 = vmatpush.msra.mxu0 0.0
        %960 = vmatpush.msra.mxu0 0.0
        %961 = vmatpush.msra.mxu0 0.0
        %962 = vmatpush.msra.mxu0 0.0
        %963 = vmatpush.msra.mxu0 0.0
        %964 = vmatpush.msra.mxu0 0.0
        %965 = vmatpush.msra.mxu0 0.0
        %966 = vmatpush.msra.mxu0 0.0
        %967 = vmatpush.msra.mxu0 0.0
        %968 = vmatpush.msra.mxu0 0.0
        %969 = vmatpush.msra.mxu0 0.0
        %970 = vmatpush.msra.mxu0 %v950
        %971 = vmatmul.f32.gmra.mxu0 %v953
        %v972 = vpop.f32.mrf.mxu0
        %v973 = vadd.f32 0.0, %v972
        %974 = vdwg.mxu0
        %v975 = vrcp.pop %v948
        %v976 = vmul.f32 %v948, %v975
        %v977 = vsub.f32 1.0, %v976
        %v978 = vmul.f32 %v975, %v977
        %v979 = vadd.f32 %v975, %v978
        %vm980 = vweird.f32 %v948
        %vm981 = vweird.f32 %v975
        %vm982 = vmor %vm980, %vm981
        %v983 = vsel %vm982, %v975, %v979
        %v984 = vand.u32 2147483647, %v948
        %vm985 = vcmp.eq.f32.partialorder %v984, 8.507059e+37
        %v986 = vand.u32 %v948, 2147483648
        %v987 = vor.u32 1.1754944e-38, %v986
        %v988 = vsel %vm985, %v987, %v983
        %v989 = vmul.f32 %v973, %v988
        %991 = vrot.lane.b32.xlu0 %v989, 24
        %v992 = vpop.permute.xlu0 %991
        %vm994 = vcmask 261312
        %995 = vst.msk [vmem:[#allocation4] sm:$0xff] %vm994, %v992
        %v996 = vld [vmem:[#allocation4] sm:$0xff]
        %v997 = vld [vmem:[#allocation16] sm:$0xff]
        %v998 = vld [vmem:[#allocation16 + $0x8] sm:$0xff]
        %v999 = vld [vmem:[#allocation16 + $0x10] sm:$0xff]
        %v1000 = vld [vmem:[#allocation16 + $0x18] sm:$0xff]
        %v1001 = vld [vmem:[%s10] sm:$0x1]
        %v1003 = vperm.slane %v1001, 0
        %v1006 = vsel %vm642, %v996, 0
        %1008 = vmatpush.msra.mxu0 0.0
        %1009 = vmatpush.msra.mxu0 0.0
        %1010 = vmatpush.msra.mxu0 0.0
        %1011 = vmatpush.msra.mxu0 0.0
        %1012 = vmatpush.msra.mxu0 0.0
        %1013 = vmatpush.msra.mxu0 0.0
        %1014 = vmatpush.msra.mxu0 0.0
        %1015 = vmatpush.msra.mxu0 0.0
        %1016 = vmatpush.msra.mxu0 0.0
        %1017 = vmatpush.msra.mxu0 0.0
        %1018 = vmatpush.msra.mxu0 0.0
        %1019 = vmatpush.msra.mxu0 0.0
        %1020 = vmatpush.msra.mxu0 %v1000
        %1021 = vmatpush.msra.mxu0 %v999
        %1022 = vmatpush.msra.mxu0 %v998
        %1023 = vmatpush.msra.mxu0 %v997
        %1024 = vmatmul.f32.gmra.mxu0 %v1006
        %v1025 = vpop.f32.mrf.mxu0
        %v1026 = vadd.f32 %v1003, %v1025
        %1027 = vdwg.mxu0
        %1028 = vst.msk [vmem:[%s561] sm:$0xff] %vm642, %v1026
        %s1029 = sand.u32 %s303, 1
        %s1030 = scalar_lea.sflag [#allocation7], %s1029
        %s1031 = sand.u32 %s303, 1
        %s1032 = smul.addr %s1031, 8
        %s1033 = scalar_lea.vmem [#allocation17], %s1032
        // Predicated region
        $region97: #{tpu_custom_call.1} parent=63 // pred_check
          %p1034 = pneg %p313
        $region98: #{tpu_custom_call.1} parent=63 // pred_check_branch
          %1036 = sbr.rel (%p1034) target = $region100
        $region99: #{tpu_custom_call.1} parent=63 // pred_region
          %1038 = vsyncadd %s1030, 0
          %s1039 = sadd.s32 %s38, %s37
          %s1040 = smul.addr %s1039, 8
          %s1041 = scalar_lea.hbm %s11, %s1040
          %s1043 = sshll.u32 %s1033, 4
          %s1044 = int_to_ptr.vmem [resolvable:$true] %s1043
          %s1045 = sshll.u32 %s1041, 4
          %s1046 = int_to_ptr.hbm [resolvable:$true] %s1045
          %1048 = dma.vmem_to_hbm [thread:$0]  %s1044, 128, %s1046, %s1030
        $region100: #{tpu_custom_call.1} parent=63 // pred_fallthru
          _
      $region64: #{tpu_custom_call.1} parent=5 // pred_fallthru
        _
      %p1049 = scmp.le.s32.totalorder 2, %s28
      // Predicated region
      $region101: #{tpu_custom_call.1} parent=5 // pred_check
        %p1050 = pneg %p1049
      $region102: #{tpu_custom_call.1} parent=5 // pred_check_branch
        %1052 = sbr.rel (%p1050) target = $region104
      $region103: #{tpu_custom_call.1} parent=5 // pred_region
        %s1053 = ssub.s32 %s28, 2
        // Predicated region
        $region105: #{tpu_custom_call.1} parent=103 // pred_check
          %p1054 = pneg %p319
        $region106: #{tpu_custom_call.1} parent=103 // pred_check_branch
          %1056 = sbr.rel (%p1054) target = $region108
        $region107: #{tpu_custom_call.1} parent=103 // pred_region
          %s1057 = sand.u32 %s304, 1
          %s1058 = scalar_lea.sflag [#allocation7], %s1057
          %s1059 = sand.u32 %s304, 1
          %s1060 = smul.addr %s1059, 8
          %s1061 = scalar_lea.vmem [#allocation17], %s1060
          %1063 = dma.done %s1058, 128
        $region108: #{tpu_custom_call.1} parent=103 // pred_fallthru
          _
      $region104: #{tpu_custom_call.1} parent=5 // pred_fallthru
        _
    $region6: #{tpu_custom_call.1} parent=1 // loop_footer
      %s32 = sadd.s32 1, %s28
    $region7: #{tpu_custom_call.1} parent=1 // loop_footer_branch
      %27 = sbr.rel target = $region3
    $region8: #{tpu_custom_call.1} parent=1 // loop_exit
      _
    %1064 = vsyncpa [#allocation6], 1
    %s1065 = scalar_lea.sflag [#allocation6], 1
    %1066 = vsyncpa %s1065, 1
    %1067 = vsyncpa [#allocation9], 1
    %s1068 = scalar_lea.sflag [#allocation9], 1
    %1069 = vsyncpa %s1068, 1
    %1070 = vsyncpa [#allocation12], 1
    %1071 = vsyncpa [#allocation15], 1
    %1072 = vsyncpa [#allocation7], 1
    %s1073 = scalar_lea.sflag [#allocation7], 1
    %1074 = vsyncpa %s1073, 1

// kernel: tpu_custom_call.1
$region0: #{tpu_custom_call.1}
  #allocation0 [shape = 'u32[]', space=smem, size = 0x4, offset = 0x4, fixed_abs, tag = 'smem constant byte address 0x4 - core index']
  #allocation1 [shape = 'u32[72,128]{1,0:T(1,128)}', space=vmem, size = 0x9000, scoped, tag = 'internal scratch']
  #allocation2 [shape = 'f32[8,32]{1,0:T(8,128)}', space=vmem, size = 0x1000, scoped, tag = 'scratch operand']
  #allocation3 [shape = 'f32[8,32]{1,0:T(8,128)}', space=vmem, size = 0x1000, scoped, tag = 'scratch operand']
  #allocation4 [shape = 'f32[8,32]{1,0:T(8,128)}', space=vmem, size = 0x1000, scoped, tag = 'scratch operand']
  %s0 = inlined_call_operand.hbm [shape: f32[2,8,32], index: 0, kind: input, shape index: {}]
  %s1 = inlined_call_operand.hbm [shape: f32[2,8,32], index: 1, kind: input, shape index: {}]
  %s2 = inlined_call_operand.hbm [shape: f32[2,8,32], index: 2, kind: input, shape index: {}]
  %s3 = inlined_call_operand.hbm [shape: f32[32,32], index: 3, kind: input, shape index: {}]
  %s4 = inlined_call_operand.vmem [shape: f32[1,32], index: 4, kind: input, shape index: {}]
  %s5 = inlined_call_operand.hbm [shape: f32[32,32], index: 5, kind: input, shape index: {}]
  %s6 = inlined_call_operand.vmem [shape: f32[1,32], index: 6, kind: input, shape index: {}]
  %s7 = inlined_call_operand.hbm [shape: f32[32,32], index: 7, kind: input, shape index: {}]
  %s8 = inlined_call_operand.vmem [shape: f32[1,32], index: 8, kind: input, shape index: {}]
  %s9 = inlined_call_operand.hbm [shape: f32[32,32], index: 9, kind: input, shape index: {}]
  %s10 = inlined_call_operand.vmem [shape: f32[1,32], index: 10, kind: input, shape index: {}]
  %s11 = inlined_call_operand.hbm [shape: f32[2,8,32], index: 11, kind: output, shape index: {}]
  %s12 = sld [smem:[#allocation0]]
  $region109: #{tpu_custom_call.1} parent=0
    _
  %s14 = ssub.s32 1, %s12
  %s15 = scalar_select 0, %s14, %s12
  $region1: #{tpu_custom_call.1} parent=0
    #allocation5 [shape = 'u8[8192]{0}', space=vmem, size = 0x2000, scoped, tag = 'input window, operand 0']
    #allocation6 [shape = 's32[2]{0}', space=sflag, size = 0x8, scoped, tag = 'scoped memory for tpu_custom_call.1']
    #allocation7 [shape = 's32[2]{0}', space=sflag, size = 0x8, scoped, tag = 'scoped memory for tpu_custom_call.1']
    #allocation8 [shape = 'u8[8192]{0}', space=vmem, size = 0x2000, scoped, tag = 'input window, operand 1']
    #allocation9 [shape = 's32[2]{0}', space=sflag, size = 0x8, scoped, tag = 'scoped memory for tpu_custom_call.1']
    #allocation10 [shape = 'u8[8192]{0}', space=vmem, size = 0x2000, scoped, tag = 'input window, operand 2']
    #allocation11 [shape = 'u8[16384]{0}', space=vmem, size = 0x4000, scoped, tag = 'input window, operand 3, single buffered']
    #allocation12 [shape = 's32[1]{0}', space=sflag, size = 0x4, scoped, tag = 'scoped memory for tpu_custom_call.1']
    #allocation13 [shape = 'u8[16384]{0}', space=vmem, size = 0x4000, scoped, tag = 'input window, operand 5, single buffered']
    #allocation14 [shape = 'u8[16384]{0}', space=vmem, size = 0x4000, scoped, tag = 'input window, operand 7, single buffered']
    #allocation15 [shape = 's32[1]{0}', space=sflag, size = 0x4, scoped, tag = 'scoped memory for tpu_custom_call.1']
    #allocation16 [shape = 'u8[16384]{0}', space=vmem, size = 0x4000, scoped, tag = 'input window, operand 9, single buffered']
    #allocation17 [shape = 'u8[8192]{0}', space=vmem, size = 0x2000, scoped, tag = 'output window, operand 0']
    %16 = vsyncpa [#allocation6], 0
    %s17 = scalar_lea.sflag [#allocation6], 1
    %18 = vsyncpa %s17, 0
    %19 = vsyncpa [#allocation9], 0
    %s20 = scalar_lea.sflag [#allocation9], 1
    %21 = vsyncpa %s20, 0
    %22 = vsyncpa [#allocation12], 0
    %23 = vsyncpa [#allocation15], 0
    %24 = vsyncpa [#allocation7], 0
    %s25 = scalar_lea.sflag [#allocation7], 1
    %26 = vsyncpa %s25, 0
    loop: start=0, step=1, limit=4
    $region2: #{tpu_custom_call.1} parent=1 // loop_pre_header
      _
    $region3: #{tpu_custom_call.1} parent=1 // loop_header
      %s28 = sphi 0, %s32
      %p29 = scmp.ge.s32.totalorder %s28, 4
      %s35 = sphi 0, %s47
      %s36 = sphi 0, %s43
      %s37 = sphi 0, %s35
      %s38 = sphi 0, %s36
      %s39 = sphi 0, %s37
      %s40 = sphi 0, %s38
      %s52 = sphi 0, %s54
      %s55 = sphi 0, %s52
      %s56 = sphi 0, %s55
      %s72 = sphi 0, %s56
      %s78 = sphi 0, %s80
      %s81 = sphi 0, %s78
      %s82 = sphi 0, %s81
      %s98 = sphi 0, %s82
      %s104 = sphi 0, %s106
      %s107 = sphi 0, %s104
      %s108 = sphi 0, %s107
      %s124 = sphi 0, %s108
      %s128 = sphi 0, %s128
      %s130 = sphi 0, %s128
      %s131 = sphi 0, %s130
      %s145 = sphi 0, %s131
      %s149 = sphi 0, %s149
      %s151 = sphi 0, %s149
      %s152 = sphi 0, %s151
      %s166 = sphi 0, %s152
      %s170 = sphi 0, %s170
      %s172 = sphi 0, %s170
      %s173 = sphi 0, %s172
      %s187 = sphi 0, %s173
      %s191 = sphi 0, %s191
      %s193 = sphi 0, %s191
      %s194 = sphi 0, %s193
      %s208 = sphi 0, %s194
      %s212 = sphi 0, %s212
      %s214 = sphi 0, %s212
      %s215 = sphi 0, %s214
      %s229 = sphi 0, %s215
      %s233 = sphi 0, %s233
      %s235 = sphi 0, %s233
      %s236 = sphi 0, %s235
      %s250 = sphi 0, %s236
      %s254 = sphi 0, %s254
      %s256 = sphi 0, %s254
      %s257 = sphi 0, %s256
      %s271 = sphi 0, %s257
      %s275 = sphi 0, %s275
      %s277 = sphi 0, %s275
      %s278 = sphi 0, %s277
      %s292 = sphi 0, %s278
      %s300 = sphi 0, %s302
      %s303 = sphi 0, %s300
      %s304 = sphi 0, %s303
      %s320 = sphi 0, %s304
    $region4: #{tpu_custom_call.1} parent=1 // loop_header_branch
      %31 = sbr.rel (%p29) target = $region8
    $region5: #{tpu_custom_call.1} parent=1 // loop_body
      %s33 = ssub.s32 %s28, 1
      %s34 = ssub.s32 %s28, 2
      %s41 = sadd.s32 1, %s36
      %p42 = scmp.ge.s32.totalorder %s41, 1
      %s43 = scalar_select %p42, 0, %s41
      %s44 = sadd.s32 1, %s35
      %s45 = scalar_select %p42, %s44, %s35
      %p46 = scmp.ge.s32.totalorder %s45, 2
      %s47 = scalar_select %p46, 0, %s45
      %s48 = ssub.s32 %s35, %s47
      %s49 = ssub.s32 %s36, %s43
      %s50 = sor.u32 %s48, %s49
      %p51 = scmp.eq.s32.totalorder %s50, 0
      %s53 = sadd.s32 %s52, 1
      %s54 = scalar_select %p51, %s52, %s53
      %p57 = pneg %p51
      %p58 = scmp.eq.s32.totalorder %s28, 1
      %p59 = por %p57, %p58
      %p60 = scmp.ne.s32.totalorder %s52, %s55
      %p61 = scmp.eq.s32.totalorder %s28, 0
      %p62 = por %p60, %p61
      %p63 = scmp.ne.s32.totalorder %s52, %s55
      %p64 = scmp.eq.s32.totalorder %s33, 1
      %p65 = por %p63, %p64
      %p66 = scmp.ne.s32.totalorder %s55, %s56
      %p67 = scmp.eq.s32.totalorder %s33, 0
      %p68 = por %p66, %p67
      %p69 = scmp.ne.s32.totalorder %s55, %s56
      %p70 = scmp.eq.s32.totalorder %s34, 1
      %p71 = por %p69, %p70
      %p73 = scmp.ne.s32.totalorder %s56, %s72
      %p74 = scmp.eq.s32.totalorder %s34, 0
      %p75 = por %p73, %p74
      %s76 = ssub.s32 %s35, %s47
      %p77 = scmp.eq.s32.totalorder %s76, 0
      %s79 = sadd.s32 %s78, 1
      %s80 = scalar_select %p77, %s78, %s79
      %p83 = pneg %p77
      %p84 = scmp.eq.s32.totalorder %s28, 1
      %p85 = por %p83, %p84
      %p86 = scmp.ne.s32.totalorder %s78, %s81
      %p87 = scmp.eq.s32.totalorder %s28, 0
      %p88 = por %p86, %p87
      %p89 = scmp.ne.s32.totalorder %s78, %s81
      %p90 = scmp.eq.s32.totalorder %s33, 1
      %p91 = por %p89, %p90
      %p92 = scmp.ne.s32.totalorder %s81, %s82
      %p93 = scmp.eq.s32.totalorder %s33, 0
      %p94 = por %p92, %p93
      %p95 = scmp.ne.s32.totalorder %s81, %s82
      %p96 = scmp.eq.s32.totalorder %s34, 1
      %p97 = por %p95, %p96
      %p99 = scmp.ne.s32.totalorder %s82, %s98
      %p100 = scmp.eq.s32.totalorder %s34, 0
      %p101 = por %p99, %p100
      %s102 = ssub.s32 %s35, %s47
      %p103 = scmp.eq.s32.totalorder %s102, 0
      %s105 = sadd.s32 %s104, 1
      %s106 = scalar_select %p103, %s104, %s105
      %p109 = pneg %p103
      %p110 = scmp.eq.s32.totalorder %s28, 1
      %p111 = por %p109, %p110
      %p112 = scmp.ne.s32.totalorder %s104, %s107
      %p113 = scmp.eq.s32.totalorder %s28, 0
      %p114 = por %p112, %p113
      %p115 = scmp.ne.s32.totalorder %s104, %s107
      %p116 = scmp.eq.s32.totalorder %s33, 1
      %p117 = por %p115, %p116
      %p118 = scmp.ne.s32.totalorder %s107, %s108
      %p119 = scmp.eq.s32.totalorder %s33, 0
      %p120 = por %p118, %p119
      %p121 = scmp.ne.s32.totalorder %s107, %s108
      %p122 = scmp.eq.s32.totalorder %s34, 1
      %p123 = por %p121, %p122
      %p125 = scmp.ne.s32.totalorder %s108, %s124
      %p126 = scmp.eq.s32.totalorder %s34, 0
      %p127 = por %p125, %p126
      %s129 = sadd.s32 %s128, 1
      %p132 = scmp.eq.s32.totalorder %s28, 1
      %p133 = scmp.ne.s32.totalorder %s128, %s130
      %p134 = scmp.eq.s32.totalorder %s28, 0
      %p135 = por %p133, %p134
      %p136 = scmp.ne.s32.totalorder %s128, %s130
      %p137 = scmp.eq.s32.totalorder %s33, 1
      %p138 = por %p136, %p137
      %p139 = scmp.ne.s32.totalorder %s130, %s131
      %p140 = scmp.eq.s32.totalorder %s33, 0
      %p141 = por %p139, %p140
      %p142 = scmp.ne.s32.totalorder %s130, %s131
      %p143 = scmp.eq.s32.totalorder %s34, 1
      %p144 = por %p142, %p143
      %p146 = scmp.ne.s32.totalorder %s131, %s145
      %p147 = scmp.eq.s32.totalorder %s34, 0
      %p148 = por %p146, %p147
      %s150 = sadd.s32 %s149, 1
      %p153 = scmp.eq.s32.totalorder %s28, 1
      %p154 = scmp.ne.s32.totalorder %s149, %s151
      %p155 = scmp.eq.s32.totalorder %s28, 0
      %p156 = por %p154, %p155
      %p157 = scmp.ne.s32.totalorder %s149, %s151
      %p158 = scmp.eq.s32.totalorder %s33, 1
      %p159 = por %p157, %p158
      %p160 = scmp.ne.s32.totalorder %s151, %s152
      %p161 = scmp.eq.s32.totalorder %s33, 0
      %p162 = por %p160, %p161
      %p163 = scmp.ne.s32.totalorder %s151, %s152
      %p164 = scmp.eq.s32.totalorder %s34, 1
      %p165 = por %p163, %p164
      %p167 = scmp.ne.s32.totalorder %s152, %s166
      %p168 = scmp.eq.s32.totalorder %s34, 0
      %p169 = por %p167, %p168
      %s171 = sadd.s32 %s170, 1
      %p174 = scmp.eq.s32.totalorder %s28, 1
      %p175 = scmp.ne.s32.totalorder %s170, %s172
      %p176 = scmp.eq.s32.totalorder %s28, 0
      %p177 = por %p175, %p176
      %p178 = scmp.ne.s32.totalorder %s170, %s172
      %p179 = scmp.eq.s32.totalorder %s33, 1
      %p180 = por %p178, %p179
      %p181 = scmp.ne.s32.totalorder %s172, %s173
      %p182 = scmp.eq.s32.totalorder %s33, 0
      %p183 = por %p181, %p182
      %p184 = scmp.ne.s32.totalorder %s172, %s173
      %p185 = scmp.eq.s32.totalorder %s34, 1
      %p186 = por %p184, %p185
      %p188 = scmp.ne.s32.totalorder %s173, %s187
      %p189 = scmp.eq.s32.totalorder %s34, 0
      %p190 = por %p188, %p189
      %s192 = sadd.s32 %s191, 1
      %p195 = scmp.eq.s32.totalorder %s28, 1
      %p196 = scmp.ne.s32.totalorder %s191, %s193
      %p197 = scmp.eq.s32.totalorder %s28, 0
      %p198 = por %p196, %p197
      %p199 = scmp.ne.s32.totalorder %s191, %s193
      %p200 = scmp.eq.s32.totalorder %s33, 1
      %p201 = por %p199, %p200
      %p202 = scmp.ne.s32.totalorder %s193, %s194
      %p203 = scmp.eq.s32.totalorder %s33, 0
      %p204 = por %p202, %p203
      %p205 = scmp.ne.s32.totalorder %s193, %s194
      %p206 = scmp.eq.s32.totalorder %s34, 1
      %p207 = por %p205, %p206
      %p209 = scmp.ne.s32.totalorder %s194, %s208
      %p210 = scmp.eq.s32.totalorder %s34, 0
      %p211 = por %p209, %p210
      %s213 = sadd.s32 %s212, 1
      %p216 = scmp.eq.s32.totalorder %s28, 1
      %p217 = scmp.ne.s32.totalorder %s212, %s214
      %p218 = scmp.eq.s32.totalorder %s28, 0
      %p219 = por %p217, %p218
      %p220 = scmp.ne.s32.totalorder %s212, %s214
      %p221 = scmp.eq.s32.totalorder %s33, 1
      %p222 = por %p220, %p221
      %p223 = scmp.ne.s32.totalorder %s214, %s215
      %p224 = scmp.eq.s32.totalorder %s33, 0
      %p225 = por %p223, %p224
      %p226 = scmp.ne.s32.totalorder %s214, %s215
      %p227 = scmp.eq.s32.totalorder %s34, 1
      %p228 = por %p226, %p227
      %p230 = scmp.ne.s32.totalorder %s215, %s229
      %p231 = scmp.eq.s32.totalorder %s34, 0
      %p232 = por %p230, %p231
      %s234 = sadd.s32 %s233, 1
      %p237 = scmp.eq.s32.totalorder %s28, 1
      %p238 = scmp.ne.s32.totalorder %s233, %s235
      %p239 = scmp.eq.s32.totalorder %s28, 0
      %p240 = por %p238, %p239
      %p241 = scmp.ne.s32.totalorder %s233, %s235
      %p242 = scmp.eq.s32.totalorder %s33, 1
      %p243 = por %p241, %p242
      %p244 = scmp.ne.s32.totalorder %s235, %s236
      %p245 = scmp.eq.s32.totalorder %s33, 0
      %p246 = por %p244, %p245
      %p247 = scmp.ne.s32.totalorder %s235, %s236
      %p248 = scmp.eq.s32.totalorder %s34, 1
      %p249 = por %p247, %p248
      %p251 = scmp.ne.s32.totalorder %s236, %s250
      %p252 = scmp.eq.s32.totalorder %s34, 0
      %p253 = por %p251, %p252
      %s255 = sadd.s32 %s254, 1
      %p258 = scmp.eq.s32.totalorder %s28, 1
      %p259 = scmp.ne.s32.totalorder %s254, %s256
      %p260 = scmp.eq.s32.totalorder %s28, 0
      %p261 = por %p259, %p260
      %p262 = scmp.ne.s32.totalorder %s254, %s256
      %p263 = scmp.eq.s32.totalorder %s33, 1
      %p264 = por %p262, %p263
      %p265 = scmp.ne.s32.totalorder %s256, %s257
      %p266 = scmp.eq.s32.totalorder %s33, 0
      %p267 = por %p265, %p266
      %p268 = scmp.ne.s32.totalorder %s256, %s257
      %p269 = scmp.eq.s32.totalorder %s34, 1
      %p270 = por %p268, %p269
      %p272 = scmp.ne.s32.totalorder %s257, %s271
      %p273 = scmp.eq.s32.totalorder %s34, 0
      %p274 = por %p272, %p273
      %s276 = sadd.s32 %s275, 1
      %p279 = scmp.eq.s32.totalorder %s28, 1
      %p280 = scmp.ne.s32.totalorder %s275, %s277
      %p281 = scmp.eq.s32.totalorder %s28, 0
      %p282 = por %p280, %p281
      %p283 = scmp.ne.s32.totalorder %s275, %s277
      %p284 = scmp.eq.s32.totalorder %s33, 1
      %p285 = por %p283, %p284
      %p286 = scmp.ne.s32.totalorder %s277, %s278
      %p287 = scmp.eq.s32.totalorder %s33, 0
      %p288 = por %p286, %p287
      %p289 = scmp.ne.s32.totalorder %s277, %s278
      %p290 = scmp.eq.s32.totalorder %s34, 1
      %p291 = por %p289, %p290
      %p293 = scmp.ne.s32.totalorder %s278, %s292
      %p294 = scmp.eq.s32.totalorder %s34, 0
      %p295 = por %p293, %p294
      %s296 = ssub.s32 %s35, %s47
      %s297 = ssub.s32 %s36, %s43
      %s298 = sor.u32 %s296, %s297
      %p299 = scmp.eq.s32.totalorder %s298, 0
      %s301 = sadd.s32 %s300, 1
      %s302 = scalar_select %p299, %s300, %s301
      %p305 = pneg %p299
      %p306 = scmp.eq.s32.totalorder %s28, 1
      %p307 = por %p305, %p306
      %p308 = scmp.ne.s32.totalorder %s300, %s303
      %p309 = scmp.eq.s32.totalorder %s28, 0
      %p310 = por %p308, %p309
      %p311 = scmp.ne.s32.totalorder %s300, %s303
      %p312 = scmp.eq.s32.totalorder %s33, 1
      %p313 = por %p311, %p312
      %p314 = scmp.ne.s32.totalorder %s303, %s304
      %p315 = scmp.eq.s32.totalorder %s33, 0
      %p316 = por %p314, %p315
      %p317 = scmp.ne.s32.totalorder %s303, %s304
      %p318 = scmp.eq.s32.totalorder %s34, 1
      %p319 = por %p317, %p318
      %p321 = scmp.ne.s32.totalorder %s304, %s320
      %p322 = scmp.eq.s32.totalorder %s34, 0
      %p323 = por %p321, %p322
      %p324 = scmp.le.s32.totalorder 1, %s28
      %p325 = scmp.lt.s32.totalorder %s28, 3
      %p326 = pnand %p324, %p325
      %p327 = pneg %p326
      // Predicated region
      $region9: #{tpu_custom_call.1} parent=5 // pred_check
        _
      $region10: #{tpu_custom_call.1} parent=5 // pred_check_branch
        %329 = sbr.rel (%p326) target = $region12
      $region11: #{tpu_custom_call.1} parent=5 // pred_region
        %s330 = ssub.s32 %s28, 1
        // Predicated region
        $region13: #{tpu_custom_call.1} parent=11 // pred_check
          %p331 = pneg %p141
        $region14: #{tpu_custom_call.1} parent=11 // pred_check_branch
          %333 = sbr.rel (%p331) target = $region16
        $region15: #{tpu_custom_call.1} parent=11 // pred_region
          %335 = vsyncadd [#allocation12], 0
          %s336 = sshll.u32 %s3, 4
          %s337 = int_to_ptr.hbm [resolvable:$true] %s336
          %s338 = sshll.u32 [#allocation11], 4
          %s339 = int_to_ptr.vmem [resolvable:$true] %s338
          %344 = dma.hbm_to_vmem [thread:$0]  %s337, 512, %s339, [#allocation12], 128, 128, 8
        $region16: #{tpu_custom_call.1} parent=11 // pred_fallthru
          _
        // Predicated region
        $region17: #{tpu_custom_call.1} parent=11 // pred_check
          %p345 = pneg %p162
        $region18: #{tpu_custom_call.1} parent=11 // pred_check_branch
          %347 = sbr.rel (%p345) target = $region20
        $region19: #{tpu_custom_call.1} parent=11 // pred_region
          _
        $region20: #{tpu_custom_call.1} parent=11 // pred_fallthru
          _
        // Predicated region
        $region21: #{tpu_custom_call.1} parent=11 // pred_check
          %p348 = pneg %p183
        $region22: #{tpu_custom_call.1} parent=11 // pred_check_branch
          %350 = sbr.rel (%p348) target = $region24
        $region23: #{tpu_custom_call.1} parent=11 // pred_region
          %352 = vsyncadd [#allocation12], 0
          %s353 = sshll.u32 %s5, 4
          %s354 = int_to_ptr.hbm [resolvable:$true] %s353
          %s355 = sshll.u32 [#allocation13], 4
          %s356 = int_to_ptr.vmem [resolvable:$true] %s355
          %361 = dma.hbm_to_vmem [thread:$0]  %s354, 512, %s356, [#allocation12], 128, 128, 8
        $region24: #{tpu_custom_call.1} parent=11 // pred_fallthru
          _
        // Predicated region
        $region25: #{tpu_custom_call.1} parent=11 // pred_check
          %p362 = pneg %p204
        $region26: #{tpu_custom_call.1} parent=11 // pred_check_branch
          %364 = sbr.rel (%p362) target = $region28
        $region27: #{tpu_custom_call.1} parent=11 // pred_region
          _
        $region28: #{tpu_custom_call.1} parent=11 // pred_fallthru
          _
        // Predicated region
        $region29: #{tpu_custom_call.1} parent=11 // pred_check
          %p365 = pneg %p225
        $region30: #{tpu_custom_call.1} parent=11 // pred_check_branch
          %367 = sbr.rel (%p365) target = $region32
        $region31: #{tpu_custom_call.1} parent=11 // pred_region
          %369 = vsyncadd [#allocation15], 0
          %s370 = sshll.u32 %s7, 4
          %s371 = int_to_ptr.hbm [resolvable:$true] %s370
          %s372 = sshll.u32 [#allocation14], 4
          %s373 = int_to_ptr.vmem [resolvable:$true] %s372
          %378 = dma.hbm_to_vmem [thread:$0]  %s371, 512, %s373, [#allocation15], 128, 128, 8
        $region32: #{tpu_custom_call.1} parent=11 // pred_fallthru
          _
        // Predicated region
        $region33: #{tpu_custom_call.1} parent=11 // pred_check
          %p379 = pneg %p246
        $region34: #{tpu_custom_call.1} parent=11 // pred_check_branch
          %381 = sbr.rel (%p379) target = $region36
        $region35: #{tpu_custom_call.1} parent=11 // pred_region
          _
        $region36: #{tpu_custom_call.1} parent=11 // pred_fallthru
          _
        // Predicated region
        $region37: #{tpu_custom_call.1} parent=11 // pred_check
          %p382 = pneg %p267
        $region38: #{tpu_custom_call.1} parent=11 // pred_check_branch
          %384 = sbr.rel (%p382) target = $region40
        $region39: #{tpu_custom_call.1} parent=11 // pred_region
          %386 = vsyncadd [#allocation15], 0
          %s387 = sshll.u32 %s9, 4
          %s388 = int_to_ptr.hbm [resolvable:$true] %s387
          %s389 = sshll.u32 [#allocation16], 4
          %s390 = int_to_ptr.vmem [resolvable:$true] %s389
          %395 = dma.hbm_to_vmem [thread:$0]  %s388, 512, %s390, [#allocation15], 128, 128, 8
        $region40: #{tpu_custom_call.1} parent=11 // pred_fallthru
          _
        // Predicated region
        $region41: #{tpu_custom_call.1} parent=11 // pred_check
          %p396 = pneg %p288
        $region42: #{tpu_custom_call.1} parent=11 // pred_check_branch
          %398 = sbr.rel (%p396) target = $region44
        $region43: #{tpu_custom_call.1} parent=11 // pred_region
          _
        $region44: #{tpu_custom_call.1} parent=11 // pred_fallthru
          _
      $region12: #{tpu_custom_call.1} parent=5 // pred_fallthru
        _
      %p399 = scmp.lt.s32.totalorder %s28, 2
      // Predicated region
      $region45: #{tpu_custom_call.1} parent=5 // pred_check
        %p400 = pneg %p399
      $region46: #{tpu_custom_call.1} parent=5 // pred_check_branch
        %402 = sbr.rel (%p400) target = $region48
      $region47: #{tpu_custom_call.1} parent=5 // pred_region
        // Predicated region
        $region49: #{tpu_custom_call.1} parent=47 // pred_check
          %p403 = pneg %p62
        $region50: #{tpu_custom_call.1} parent=47 // pred_check_branch
          %405 = sbr.rel (%p403) target = $region52
        $region51: #{tpu_custom_call.1} parent=47 // pred_region
          %s406 = sand.u32 %s52, 1
          %s407 = scalar_lea.sflag [#allocation6], %s406
          %s408 = sand.u32 %s52, 1
          %s409 = smul.addr %s408, 8
          %s410 = scalar_lea.vmem [#allocation5], %s409
          %412 = vsyncadd %s407, 0
          %s413 = sadd.s32 %s36, %s35
          %s414 = smul.addr %s413, 8
          %s415 = scalar_lea.hbm %s0, %s414
          %s417 = sshll.u32 %s415, 4
          %s418 = int_to_ptr.hbm [resolvable:$true] %s417
          %s419 = sshll.u32 %s410, 4
          %s420 = int_to_ptr.vmem [resolvable:$true] %s419
          %422 = dma.hbm_to_vmem [thread:$0]  %s418, 128, %s420, %s407
        $region52: #{tpu_custom_call.1} parent=47 // pred_fallthru
          _
        // Predicated region
        $region53: #{tpu_custom_call.1} parent=47 // pred_check
          %p423 = pneg %p88
        $region54: #{tpu_custom_call.1} parent=47 // pred_check_branch
          %425 = sbr.rel (%p423) target = $region56
        $region55: #{tpu_custom_call.1} parent=47 // pred_region
          %s426 = sand.u32 %s28, 1
          %s427 = scalar_lea.sflag [#allocation9], %s426
          %s428 = sand.u32 %s78, 1
          %s429 = smul.addr %s428, 8
          %s430 = scalar_lea.vmem [#allocation8], %s429
          %432 = vsyncadd %s427, 0
          %s433 = smul.addr %s35, 8
          %s434 = scalar_lea.hbm %s1, %s433
          %s436 = sshll.u32 %s434, 4
          %s437 = int_to_ptr.hbm [resolvable:$true] %s436
          %s438 = sshll.u32 %s430, 4
          %s439 = int_to_ptr.vmem [resolvable:$true] %s438
          %441 = dma.hbm_to_vmem [thread:$0]  %s437, 128, %s439, %s427
        $region56: #{tpu_custom_call.1} parent=47 // pred_fallthru
          _
        // Predicated region
        $region57: #{tpu_custom_call.1} parent=47 // pred_check
          %p442 = pneg %p114
        $region58: #{tpu_custom_call.1} parent=47 // pred_check_branch
          %444 = sbr.rel (%p442) target = $region60
        $region59: #{tpu_custom_call.1} parent=47 // pred_region
          %s445 = sand.u32 %s28, 1
          %s446 = scalar_lea.sflag [#allocation9], %s445
          %s447 = sand.u32 %s104, 1
          %s448 = smul.addr %s447, 8
          %s449 = scalar_lea.vmem [#allocation10], %s448
          %451 = vsyncadd %s446, 0
          %s452 = smul.addr %s35, 8
          %s453 = scalar_lea.hbm %s2, %s452
          %s455 = sshll.u32 %s453, 4
          %s456 = int_to_ptr.hbm [resolvable:$true] %s455
          %s457 = sshll.u32 %s449, 4
          %s458 = int_to_ptr.vmem [resolvable:$true] %s457
          %460 = dma.hbm_to_vmem [thread:$0]  %s456, 128, %s458, %s446
        $region60: #{tpu_custom_call.1} parent=47 // pred_fallthru
          _
      $region48: #{tpu_custom_call.1} parent=5 // pred_fallthru
        _
      %p461 = scmp.le.s32.totalorder 1, %s28
      %p462 = scmp.lt.s32.totalorder %s28, 3
      %p463 = pnand %p461, %p462
      %p464 = pneg %p463
      // Predicated region
      $region61: #{tpu_custom_call.1} parent=5 // pred_check
        _
      $region62: #{tpu_custom_call.1} parent=5 // pred_check_branch
        %466 = sbr.rel (%p463) target = $region64
      $region63: #{tpu_custom_call.1} parent=5 // pred_region
        %s467 = ssub.s32 %s28, 1
        %s468 = sand.u32 %s55, 1
        %s469 = scalar_lea.sflag [#allocation6], %s468
        %s470 = sand.u32 %s55, 1
        %s471 = smul.addr %s470, 8
        %s472 = scalar_lea.vmem [#allocation5], %s471
        // Predicated region
        $region65: #{tpu_custom_call.1} parent=63 // pred_check
          %p473 = pneg %p68
        $region66: #{tpu_custom_call.1} parent=63 // pred_check_branch
          %475 = sbr.rel (%p473) target = $region68
        $region67: #{tpu_custom_call.1} parent=63 // pred_region
          %477 = dma.done %s469, 128
        $region68: #{tpu_custom_call.1} parent=63 // pred_fallthru
          _
        %s478 = sand.u32 %s33, 1
        %s479 = scalar_lea.sflag [#allocation9], %s478
        %s480 = sand.u32 %s81, 1
        %s481 = smul.addr %s480, 8
        %s482 = scalar_lea.vmem [#allocation8], %s481
        // Predicated region
        $region69: #{tpu_custom_call.1} parent=63 // pred_check
          %p483 = pneg %p94
        $region70: #{tpu_custom_call.1} parent=63 // pred_check_branch
          %485 = sbr.rel (%p483) target = $region72
        $region71: #{tpu_custom_call.1} parent=63 // pred_region
          %487 = dma.done %s479, 128
        $region72: #{tpu_custom_call.1} parent=63 // pred_fallthru
          _
        %s488 = sand.u32 %s33, 1
        %s489 = scalar_lea.sflag [#allocation9], %s488
        %s490 = sand.u32 %s107, 1
        %s491 = smul.addr %s490, 8
        %s492 = scalar_lea.vmem [#allocation10], %s491
        // Predicated region
        $region73: #{tpu_custom_call.1} parent=63 // pred_check
          %p493 = pneg %p120
        $region74: #{tpu_custom_call.1} parent=63 // pred_check_branch
          %495 = sbr.rel (%p493) target = $region76
        $region75: #{tpu_custom_call.1} parent=63 // pred_region
          %497 = dma.done %s489, 128
        $region76: #{tpu_custom_call.1} parent=63 // pred_fallthru
          _
        // Predicated region
        $region77: #{tpu_custom_call.1} parent=63 // pred_check
          %p498 = pneg %p141
        $region78: #{tpu_custom_call.1} parent=63 // pred_check_branch
          %500 = sbr.rel (%p498) target = $region80
        $region79: #{tpu_custom_call.1} parent=63 // pred_region
          %502 = dma.done [#allocation12], 512
        $region80: #{tpu_custom_call.1} parent=63 // pred_fallthru
          _
        // Predicated region
        $region81: #{tpu_custom_call.1} parent=63 // pred_check
          %p503 = pneg %p183
        $region82: #{tpu_custom_call.1} parent=63 // pred_check_branch
          %505 = sbr.rel (%p503) target = $region84
        $region83: #{tpu_custom_call.1} parent=63 // pred_region
          %507 = dma.done [#allocation12], 512
        $region84: #{tpu_custom_call.1} parent=63 // pred_fallthru
          _
        // Predicated region
        $region85: #{tpu_custom_call.1} parent=63 // pred_check
          %p508 = pneg %p225
        $region86: #{tpu_custom_call.1} parent=63 // pred_check_branch
          %510 = sbr.rel (%p508) target = $region88
        $region87: #{tpu_custom_call.1} parent=63 // pred_region
          %512 = dma.done [#allocation15], 512
        $region88: #{tpu_custom_call.1} parent=63 // pred_fallthru
          _
        // Predicated region
        $region89: #{tpu_custom_call.1} parent=63 // pred_check
          %p513 = pneg %p267
        $region90: #{tpu_custom_call.1} parent=63 // pred_check_branch
          %515 = sbr.rel (%p513) target = $region92
        $region91: #{tpu_custom_call.1} parent=63 // pred_region
          %517 = dma.done [#allocation15], 512
        $region92: #{tpu_custom_call.1} parent=63 // pred_fallthru
          _
        %s518 = sand.u32 %s55, 1
        %s519 = scalar_lea.sflag [#allocation6], %s518
        %s520 = sand.u32 %s55, 1
        %s521 = smul.addr %s520, 8
        %s522 = scalar_lea.vmem [#allocation5], %s521
        %p523 = pneg %p68
        %p524 = pneg %p65
        %s525 = sand.u32 %s33, 1
        %s526 = scalar_lea.sflag [#allocation9], %s525
        %s527 = sand.u32 %s81, 1
        %s528 = smul.addr %s527, 8
        %s529 = scalar_lea.vmem [#allocation8], %s528
        %p530 = pneg %p94
        %p531 = pneg %p91
        %s532 = sand.u32 %s33, 1
        %s533 = scalar_lea.sflag [#allocation9], %s532
        %s534 = sand.u32 %s107, 1
        %s535 = smul.addr %s534, 8
        %s536 = scalar_lea.vmem [#allocation10], %s535
        %p537 = pneg %p120
        %p538 = pneg %p117
        %p539 = pneg %p141
        %p540 = pneg %p138
        %p541 = pneg %p162
        %p542 = pneg %p159
        %p543 = pneg %p183
        %p544 = pneg %p180
        %p545 = pneg %p204
        %p546 = pneg %p201
        %p547 = pneg %p225
        %p548 = pneg %p222
        %p549 = pneg %p246
        %p550 = pneg %p243
        %p551 = pneg %p267
        %p552 = pneg %p264
        %p553 = pneg %p288
        %p554 = pneg %p285
        %p555 = pneg %p316
        %p556 = pneg %p313
        %s557 = sand.u32 %s303, 1
        %s558 = scalar_lea.sflag [#allocation7], %s557
        %s559 = sand.u32 %s303, 1
        %s560 = smul.addr %s559, 8
        %s561 = scalar_lea.vmem [#allocation17], %s560
        %p562 = scmp.eq.s32.totalorder %s38, 0
        // Predicated region
        $region93: #{tpu_custom_call.1} parent=63 // pred_check
          %p563 = pneg %p562
        $region94: #{tpu_custom_call.1} parent=63 // pred_check_branch
          %565 = sbr.rel (%p563) target = $region96
        $region95: #{tpu_custom_call.1} parent=63 // pred_region
          %v566 = vld [vmem:[%s482] sm:$0xff]
          %v567 = vld [vmem:[%s492] sm:$0xff]
          %v568 = vld [vmem:[#allocation13] sm:$0xff]
          %v569 = vld [vmem:[#allocation13 + $0x8] sm:$0xff]
          %v570 = vld [vmem:[#allocation13 + $0x10] sm:$0xff]
          %v571 = vld [vmem:[#allocation13 + $0x18] sm:$0xff]
          %v572 = vld [vmem:[%s6] sm:$0x1]
          %v574 = vperm.slane %v572, 0
          %vm576 = vcmask 261120
          %v578 = vsel %vm576, %v566, 0
          %580 = vmatpush.msra.mxu0 0.0
          %581 = vmatpush.msra.mxu0 0.0
          %582 = vmatpush.msra.mxu0 0.0
          %583 = vmatpush.msra.mxu0 0.0
          %584 = vmatpush.msra.mxu0 0.0
          %585 = vmatpush.msra.mxu0 0.0
          %586 = vmatpush.msra.mxu0 0.0
          %587 = vmatpush.msra.mxu0 0.0
          %588 = vmatpush.msra.mxu0 0.0
          %589 = vmatpush.msra.mxu0 0.0
          %590 = vmatpush.msra.mxu0 0.0
          %591 = vmatpush.msra.mxu0 0.0
          %592 = vmatpush.msra.mxu0 %v571
          %593 = vmatpush.msra.mxu0 %v570
          %594 = vmatpush.msra.mxu0 %v569
          %595 = vmatpush.msra.mxu0 %v568
          %596 = vmatmul.f32.gmra.mxu0 %v578
          %v597 = vpop.f32.mrf.mxu0
          %v598 = vadd.f32 %v574, %v597
          %599 = vdwg.mxu0
          %600 = vst.msk [vmem:[#allocation2] sm:$0xff] %vm576, %v598
          %v601 = vld [vmem:[#allocation14] sm:$0xff]
          %v602 = vld [vmem:[#allocation14 + $0x8] sm:$0xff]
          %v603 = vld [vmem:[#allocation14 + $0x10] sm:$0xff]
          %v604 = vld [vmem:[#allocation14 + $0x18] sm:$0xff]
          %v605 = vld [vmem:[%s8] sm:$0x1]
          %v607 = vperm.slane %v605, 0
          %v610 = vsel %vm576, %v567, 0
          %612 = vmatpush.msra.mxu0 0.0
          %613 = vmatpush.msra.mxu0 0.0
          %614 = vmatpush.msra.mxu0 0.0
          %615 = vmatpush.msra.mxu0 0.0
          %616 = vmatpush.msra.mxu0 0.0
          %617 = vmatpush.msra.mxu0 0.0
          %618 = vmatpush.msra.mxu0 0.0
          %619 = vmatpush.msra.mxu0 0.0
          %620 = vmatpush.msra.mxu0 0.0
          %621 = vmatpush.msra.mxu0 0.0
          %622 = vmatpush.msra.mxu0 0.0
          %623 = vmatpush.msra.mxu0 0.0
          %624 = vmatpush.msra.mxu0 %v604
          %625 = vmatpush.msra.mxu0 %v603
          %626 = vmatpush.msra.mxu0 %v602
          %627 = vmatpush.msra.mxu0 %v601
          %628 = vmatmul.f32.gmra.mxu0 %v610
          %v629 = vpop.f32.mrf.mxu0
          %v630 = vadd.f32 %v607, %v629
          %631 = vdwg.mxu0
          %632 = vst.msk [vmem:[#allocation3] sm:$0xff] %vm576, %v630
        $region96: #{tpu_custom_call.1} parent=63 // pred_fallthru
          _
        %v633 = vld [vmem:[%s472] sm:$0xff]
        %v634 = vld [vmem:[#allocation11] sm:$0xff]
        %v635 = vld [vmem:[#allocation11 + $0x8] sm:$0xff]
        %v636 = vld [vmem:[#allocation11 + $0x10] sm:$0xff]
        %v637 = vld [vmem:[#allocation11 + $0x18] sm:$0xff]
        %v638 = vld [vmem:[%s4] sm:$0x1]
        %v640 = vperm.slane %v638, 0
        %vm642 = vcmask 261120
        %v644 = vsel %vm642, %v633, 0
        %646 = vmatpush.msra.mxu0 0.0
        %647 = vmatpush.msra.mxu0 0.0
        %648 = vmatpush.msra.mxu0 0.0
        %649 = vmatpush.msra.mxu0 0.0
        %650 = vmatpush.msra.mxu0 0.0
        %651 = vmatpush.msra.mxu0 0.0
        %652 = vmatpush.msra.mxu0 0.0
        %653 = vmatpush.msra.mxu0 0.0
        %654 = vmatpush.msra.mxu0 0.0
        %655 = vmatpush.msra.mxu0 0.0
        %656 = vmatpush.msra.mxu0 0.0
        %657 = vmatpush.msra.mxu0 0.0
        %658 = vmatpush.msra.mxu0 %v637
        %659 = vmatpush.msra.mxu0 %v636
        %660 = vmatpush.msra.mxu0 %v635
        %661 = vmatpush.msra.mxu0 %v634
        %662 = vmatmul.f32.gmra.mxu0 %v644
        %v663 = vpop.f32.mrf.mxu0
        %v664 = vadd.f32 %v640, %v663
        %665 = vdwg.mxu0
        %v666 = vld [vmem:[#allocation2] sm:$0xff]
        %v667 = vld [vmem:[#allocation3] sm:$0xff]
        %vm668 = vcmask 64512
        %v670 = vsel %vm668, %v664, 0
        %v673 = vsel %vm668, %v666, 0
        %675 = vmatpush.xpose.msra.mxu0 0.0
        %676 = vmatpush.xpose.msra.mxu0 0.0
        %677 = vmatpush.xpose.msra.mxu0 0.0
        %678 = vmatpush.xpose.msra.mxu0 0.0
        %679 = vmatpush.xpose.msra.mxu0 0.0
        %680 = vmatpush.xpose.msra.mxu0 0.0
        %681 = vmatpush.xpose.msra.mxu0 0.0
        %682 = vmatpush.xpose.msra.mxu0 0.0
        %683 = vmatpush.xpose.msra.mxu0 0.0
        %684 = vmatpush.xpose.msra.mxu0 0.0
        %685 = vmatpush.xpose.msra.mxu0 0.0
        %686 = vmatpush.xpose.msra.mxu0 0.0
        %687 = vmatpush.xpose.msra.mxu0 0.0
        %688 = vmatpush.xpose.msra.mxu0 0.0
        %689 = vmatpush.xpose.msra.mxu0 0.0
        %690 = vmatpush.xpose.msra.mxu0 %v673
        %691 = vmatmul.f32.gmra.mxu0 %v670
        %v692 = vpop.f32.mrf.mxu0
        %v693 = vadd.f32 0.0, %v692
        %694 = vdwg.mxu0
        %v695 = vsel %vm668, %v693, -inf
        %696 = vmax.xlane.f32.xlu0 %v695
        %v697 = vpop.xlane.xlu0 %696
        %v698 = vsub.f32 %v693, %v697
        %v699 = vmul.f32 %v698, 1.442695
        %v700 = vpow.pop %v699
        %v701 = vsel %vm668, %v700, 0.0
        %702 = vadd.xlane.f32.xlu0 %v701
        %v703 = vpop.xlane.xlu0 %702
        %v705 = vsel %vm668, %v700, 0
        %707 = vmatpush.msra.mxu0 0.0
        %708 = vmatpush.msra.mxu0 0.0
        %709 = vmatpush.msra.mxu0 0.0
        %710 = vmatpush.msra.mxu0 0.0
        %711 = vmatpush.msra.mxu0 0.0
        %712 = vmatpush.msra.mxu0 0.0
        %713 = vmatpush.msra.mxu0 0.0
        %714 = vmatpush.msra.mxu0 0.0
        %715 = vmatpush.msra.mxu0 0.0
        %716 = vmatpush.msra.mxu0 0.0
        %717 = vmatpush.msra.mxu0 0.0
        %718 = vmatpush.msra.mxu0 0.0
        %719 = vmatpush.msra.mxu0 0.0
        %720 = vmatpush.msra.mxu0 0.0
        %721 = vmatpush.msra.mxu0 0.0
        %722 = vmatpush.msra.mxu0 %v667
        %723 = vmatmul.f32.gmra.mxu0 %v705
        %v724 = vpop.f32.mrf.mxu0
        %v725 = vadd.f32 0.0, %v724
        %726 = vdwg.mxu0
        %v727 = vrcp.pop %v703
        %v728 = vmul.f32 %v703, %v727
        %v729 = vsub.f32 1.0, %v728
        %v730 = vmul.f32 %v727, %v729
        %v731 = vadd.f32 %v727, %v730
        %vm732 = vweird.f32 %v703
        %vm733 = vweird.f32 %v727
        %vm734 = vmor %vm732, %vm733
        %v735 = vsel %vm734, %v727, %v731
        %v736 = vand.u32 2147483647, %v703
        %vm737 = vcmp.eq.f32.partialorder %v736, 8.507059e+37
        %v738 = vand.u32 %v703, 2147483648
        %v739 = vor.u32 1.1754944e-38, %v738
        %v740 = vsel %vm737, %v739, %v735
        %v741 = vmul.f32 %v725, %v740
        %742 = vst.msk [vmem:[#allocation4] sm:$0xff] %vm668, %v741
        %743 = vrot.lane.b32.xlu0 %v664, 120
        %v744 = vpop.permute.xlu0 %743
        %745 = vrot.lane.b32.xlu0 %v666, 120
        %v746 = vpop.permute.xlu0 %745
        %v747 = vsel %vm668, %v744, 0
        %v749 = vsel %vm668, %v746, 0
        %751 = vmatpush.xpose.msra.mxu0 0.0
        %752 = vmatpush.xpose.msra.mxu0 0.0
        %753 = vmatpush.xpose.msra.mxu0 0.0
        %754 = vmatpush.xpose.msra.mxu0 0.0
        %755 = vmatpush.xpose.msra.mxu0 0.0
        %756 = vmatpush.xpose.msra.mxu0 0.0
        %757 = vmatpush.xpose.msra.mxu0 0.0
        %758 = vmatpush.xpose.msra.mxu0 0.0
        %759 = vmatpush.xpose.msra.mxu0 0.0
        %760 = vmatpush.xpose.msra.mxu0 0.0
        %761 = vmatpush.xpose.msra.mxu0 0.0
        %762 = vmatpush.xpose.msra.mxu0 0.0
        %763 = vmatpush.xpose.msra.mxu0 0.0
        %764 = vmatpush.xpose.msra.mxu0 0.0
        %765 = vmatpush.xpose.msra.mxu0 0.0
        %766 = vmatpush.xpose.msra.mxu0 %v749
        %767 = vmatmul.f32.gmra.mxu0 %v747
        %v768 = vpop.f32.mrf.mxu0
        %v769 = vadd.f32 0.0, %v768
        %770 = vdwg.mxu0
        %v771 = vsel %vm668, %v769, -inf
        %772 = vmax.xlane.f32.xlu0 %v771
        %v773 = vpop.xlane.xlu0 %772
        %v774 = vsub.f32 %v769, %v773
        %v775 = vmul.f32 %v774, 1.442695
        %v776 = vpow.pop %v775
        %v777 = vsel %vm668, %v776, 0.0
        %778 = vadd.xlane.f32.xlu0 %v777
        %v779 = vpop.xlane.xlu0 %778
        %781 = vrot.lane.b32.xlu0 %v667, 120
        %v782 = vpop.permute.xlu0 %781
        %v785 = vsel %vm668, %v776, 0
        %787 = vmatpush.msra.mxu0 0.0
        %788 = vmatpush.msra.mxu0 0.0
        %789 = vmatpush.msra.mxu0 0.0
        %790 = vmatpush.msra.mxu0 0.0
        %791 = vmatpush.msra.mxu0 0.0
        %792 = vmatpush.msra.mxu0 0.0
        %793 = vmatpush.msra.mxu0 0.0
        %794 = vmatpush.msra.mxu0 0.0
        %795 = vmatpush.msra.mxu0 0.0
        %796 = vmatpush.msra.mxu0 0.0
        %797 = vmatpush.msra.mxu0 0.0
        %798 = vmatpush.msra.mxu0 0.0
        %799 = vmatpush.msra.mxu0 0.0
        %800 = vmatpush.msra.mxu0 0.0
        %801 = vmatpush.msra.mxu0 0.0
        %802 = vmatpush.msra.mxu0 %v782
        %803 = vmatmul.f32.gmra.mxu0 %v785
        %v804 = vpop.f32.mrf.mxu0
        %v805 = vadd.f32 0.0, %v804
        %806 = vdwg.mxu0
        %v807 = vrcp.pop %v779
        %v808 = vmul.f32 %v779, %v807
        %v809 = vsub.f32 1.0, %v808
        %v810 = vmul.f32 %v807, %v809
        %v811 = vadd.f32 %v807, %v810
        %vm812 = vweird.f32 %v779
        %vm813 = vweird.f32 %v807
        %vm814 = vmor %vm812, %vm813
        %v815 = vsel %vm814, %v807, %v811
        %v816 = vand.u32 2147483647, %v779
        %vm817 = vcmp.eq.f32.partialorder %v816, 8.507059e+37
        %v818 = vand.u32 %v779, 2147483648
        %v819 = vor.u32 1.1754944e-38, %v818
        %v820 = vsel %vm817, %v819, %v815
        %v821 = vmul.f32 %v805, %v820
        %823 = vrot.lane.b32.xlu0 %v821, 8
        %v824 = vpop.permute.xlu0 %823
        %vm826 = vcmask 130112
        %827 = vst.msk [vmem:[#allocation4] sm:$0xff] %vm826, %v824
        %828 = vrot.lane.b32.xlu0 %v664, 112
        %v829 = vpop.permute.xlu0 %828
        %830 = vrot.lane.b32.xlu0 %v666, 112
        %v831 = vpop.permute.xlu0 %830
        %v832 = vsel %vm668, %v829, 0
        %v834 = vsel %vm668, %v831, 0
        %836 = vmatpush.xpose.msra.mxu0 0.0
        %837 = vmatpush.xpose.msra.mxu0 0.0
        %838 = vmatpush.xpose.msra.mxu0 0.0
        %839 = vmatpush.xpose.msra.mxu0 0.0
        %840 = vmatpush.xpose.msra.mxu0 0.0
        %841 = vmatpush.xpose.msra.mxu0 0.0
        %842 = vmatpush.xpose.msra.mxu0 0.0
        %843 = vmatpush.xpose.msra.mxu0 0.0
        %844 = vmatpush.xpose.msra.mxu0 0.0
        %845 = vmatpush.xpose.msra.mxu0 0.0
        %846 = vmatpush.xpose.msra.mxu0 0.0
        %847 = vmatpush.xpose.msra.mxu0 0.0
        %848 = vmatpush.xpose.msra.mxu0 0.0
        %849 = vmatpush.xpose.msra.mxu0 0.0
        %850 = vmatpush.xpose.msra.mxu0 0.0
        %851 = vmatpush.xpose.msra.mxu0 %v834
        %852 = vmatmul.f32.gmra.mxu0 %v832
        %v853 = vpop.f32.mrf.mxu0
        %v854 = vadd.f32 0.0, %v853
        %855 = vdwg.mxu0
        %v856 = vsel %vm668, %v854, -inf
        %857 = vmax.xlane.f32.xlu0 %v856
        %v858 = vpop.xlane.xlu0 %857
        %v859 = vsub.f32 %v854, %v858
        %v860 = vmul.f32 %v859, 1.442695
        %v861 = vpow.pop %v860
        %v862 = vsel %vm668, %v861, 0.0
        %863 = vadd.xlane.f32.xlu0 %v862
        %v864 = vpop.xlane.xlu0 %863
        %865 = vrot.lane.b32.xlu0 %v667, 112
        %v866 = vpop.permute.xlu0 %865
        %v869 = vsel %vm668, %v861, 0
        %871 = vmatpush.msra.mxu0 0.0
        %872 = vmatpush.msra.mxu0 0.0
        %873 = vmatpush.msra.mxu0 0.0
        %874 = vmatpush.msra.mxu0 0.0
        %875 = vmatpush.msra.mxu0 0.0
        %876 = vmatpush.msra.mxu0 0.0
        %877 = vmatpush.msra.mxu0 0.0
        %878 = vmatpush.msra.mxu0 0.0
        %879 = vmatpush.msra.mxu0 0.0
        %880 = vmatpush.msra.mxu0 0.0
        %881 = vmatpush.msra.mxu0 0.0
        %882 = vmatpush.msra.mxu0 0.0
        %883 = vmatpush.msra.mxu0 0.0
        %884 = vmatpush.msra.mxu0 0.0
        %885 = vmatpush.msra.mxu0 0.0
        %886 = vmatpush.msra.mxu0 %v866
        %887 = vmatmul.f32.gmra.mxu0 %v869
        %v888 = vpop.f32.mrf.mxu0
        %v889 = vadd.f32 0.0, %v888
        %890 = vdwg.mxu0
        %v891 = vrcp.pop %v864
        %v892 = vmul.f32 %v864, %v891
        %v893 = vsub.f32 1.0, %v892
        %v894 = vmul.f32 %v891, %v893
        %v895 = vadd.f32 %v891, %v894
        %vm896 = vweird.f32 %v864
        %vm897 = vweird.f32 %v891
        %vm898 = vmor %vm896, %vm897
        %v899 = vsel %vm898, %v891, %v895
        %v900 = vand.u32 2147483647, %v864
        %vm901 = vcmp.eq.f32.partialorder %v900, 8.507059e+37
        %v902 = vand.u32 %v864, 2147483648
        %v903 = vor.u32 1.1754944e-38, %v902
        %v904 = vsel %vm901, %v903, %v899
        %v905 = vmul.f32 %v889, %v904
        %907 = vrot.lane.b32.xlu0 %v905, 16
        %v908 = vpop.permute.xlu0 %907
        %vm910 = vcmask 195712
        %911 = vst.msk [vmem:[#allocation4] sm:$0xff] %vm910, %v908
        %912 = vrot.lane.b32.xlu0 %v664, 104
        %v913 = vpop.permute.xlu0 %912
        %914 = vrot.lane.b32.xlu0 %v666, 104
        %v915 = vpop.permute.xlu0 %914
        %v916 = vsel %vm668, %v913, 0
        %v918 = vsel %vm668, %v915, 0
        %920 = vmatpush.xpose.msra.mxu0 0.0
        %921 = vmatpush.xpose.msra.mxu0 0.0
        %922 = vmatpush.xpose.msra.mxu0 0.0
        %923 = vmatpush.xpose.msra.mxu0 0.0
        %924 = vmatpush.xpose.msra.mxu0 0.0
        %925 = vmatpush.xpose.msra.mxu0 0.0
        %926 = vmatpush.xpose.msra.mxu0 0.0
        %927 = vmatpush.xpose.msra.mxu0 0.0
        %928 = vmatpush.xpose.msra.mxu0 0.0
        %929 = vmatpush.xpose.msra.mxu0 0.0
        %930 = vmatpush.xpose.msra.mxu0 0.0
        %931 = vmatpush.xpose.msra.mxu0 0.0
        %932 = vmatpush.xpose.msra.mxu0 0.0
        %933 = vmatpush.xpose.msra.mxu0 0.0
        %934 = vmatpush.xpose.msra.mxu0 0.0
        %935 = vmatpush.xpose.msra.mxu0 %v918
        %936 = vmatmul.f32.gmra.mxu0 %v916
        %v937 = vpop.f32.mrf.mxu0
        %v938 = vadd.f32 0.0, %v937
        %939 = vdwg.mxu0
        %v940 = vsel %vm668, %v938, -inf
        %941 = vmax.xlane.f32.xlu0 %v940
        %v942 = vpop.xlane.xlu0 %941
        %v943 = vsub.f32 %v938, %v942
        %v944 = vmul.f32 %v943, 1.442695
        %v945 = vpow.pop %v944
        %v946 = vsel %vm668, %v945, 0.0
        %947 = vadd.xlane.f32.xlu0 %v946
        %v948 = vpop.xlane.xlu0 %947
        %949 = vrot.lane.b32.xlu0 %v667, 104
        %v950 = vpop.permute.xlu0 %949
        %v953 = vsel %vm668, %v945, 0
        %955 = vmatpush.msra.mxu0 0.0
        %956 = vmatpush.msra.mxu0 0.0
        %957 = vmatpush.msra.mxu0 0.0
        %958 = vmatpush.msra.mxu0 0.0
        %959 = vmatpush.msra.mxu0 0.0
        %960 = vmatpush.msra.mxu0 0.0
        %961 = vmatpush.msra.mxu0 0.0
        %962 = vmatpush.msra.mxu0 0.0
        %963 = vmatpush.msra.mxu0 0.0
        %964 = vmatpush.msra.mxu0 0.0
        %965 = vmatpush.msra.mxu0 0.0
        %966 = vmatpush.msra.mxu0 0.0
        %967 = vmatpush.msra.mxu0 0.0
        %968 = vmatpush.msra.mxu0 0.0
        %969 = vmatpush.msra.mxu0 0.0
        %970 = vmatpush.msra.mxu0 %v950
        %971 = vmatmul.f32.gmra.mxu0 %v953
        %v972 = vpop.f32.mrf.mxu0
        %v973 = vadd.f32 0.0, %v972
        %974 = vdwg.mxu0
        %v975 = vrcp.pop %v948
        %v976 = vmul.f32 %v948, %v975
        %v977 = vsub.f32 1.0, %v976
        %v978 = vmul.f32 %v975, %v977
        %v979 = vadd.f32 %v975, %v978
        %vm980 = vweird.f32 %v948
        %vm981 = vweird.f32 %v975
        %vm982 = vmor %vm980, %vm981
        %v983 = vsel %vm982, %v975, %v979
        %v984 = vand.u32 2147483647, %v948
        %vm985 = vcmp.eq.f32.partialorder %v984, 8.507059e+37
        %v986 = vand.u32 %v948, 2147483648
        %v987 = vor.u32 1.1754944e-38, %v986
        %v988 = vsel %vm985, %v987, %v983
        %v989 = vmul.f32 %v973, %v988
        %991 = vrot.lane.b32.xlu0 %v989, 24
        %v992 = vpop.permute.xlu0 %991
        %vm994 = vcmask 261312
        %995 = vst.msk [vmem:[#allocation4] sm:$0xff] %vm994, %v992
        %v996 = vld [vmem:[#allocation4] sm:$0xff]
        %v997 = vld [vmem:[#allocation16] sm:$0xff]
        %v998 = vld [vmem:[#allocation16 + $0x8] sm:$0xff]
        %v999 = vld [vmem:[#allocation16 + $0x10] sm:$0xff]
        %v1000 = vld [vmem:[#allocation16 + $0x18] sm:$0xff]
        %v1001 = vld [vmem:[%s10] sm:$0x1]
        %v1003 = vperm.slane %v1001, 0
        %v1006 = vsel %vm642, %v996, 0
        %1008 = vmatpush.msra.mxu0 0.0
        %1009 = vmatpush.msra.mxu0 0.0
        %1010 = vmatpush.msra.mxu0 0.0
        %1011 = vmatpush.msra.mxu0 0.0
        %1012 = vmatpush.msra.mxu0 0.0
        %1013 = vmatpush.msra.mxu0 0.0
        %1014 = vmatpush.msra.mxu0 0.0
        %1015 = vmatpush.msra.mxu0 0.0
        %1016 = vmatpush.msra.mxu0 0.0
        %1017 = vmatpush.msra.mxu0 0.0
        %1018 = vmatpush.msra.mxu0 0.0
        %1019 = vmatpush.msra.mxu0 0.0
        %1020 = vmatpush.msra.mxu0 %v1000
        %1021 = vmatpush.msra.mxu0 %v999
        %1022 = vmatpush.msra.mxu0 %v998
        %1023 = vmatpush.msra.mxu0 %v997
        %1024 = vmatmul.f32.gmra.mxu0 %v1006
        %v1025 = vpop.f32.mrf.mxu0
        %v1026 = vadd.f32 %v1003, %v1025
        %1027 = vdwg.mxu0
        %1028 = vst.msk [vmem:[%s561] sm:$0xff] %vm642, %v1026
        %s1029 = sand.u32 %s303, 1
        %s1030 = scalar_lea.sflag [#allocation7], %s1029
        %s1031 = sand.u32 %s303, 1
        %s1032 = smul.addr %s1031, 8
        %s1033 = scalar_lea.vmem [#allocation17], %s1032
        // Predicated region
        $region97: #{tpu_custom_call.1} parent=63 // pred_check
          %p1034 = pneg %p313
        $region98: #{tpu_custom_call.1} parent=63 // pred_check_branch
          %1036 = sbr.rel (%p1034) target = $region100
        $region99: #{tpu_custom_call.1} parent=63 // pred_region
          %1038 = vsyncadd %s1030, 0
          %s1039 = sadd.s32 %s38, %s37
          %s1040 = smul.addr %s1039, 8
          %s1041 = scalar_lea.hbm %s11, %s1040
          %s1043 = sshll.u32 %s1033, 4
          %s1044 = int_to_ptr.vmem [resolvable:$true] %s1043
          %s1045 = sshll.u32 %s1041, 4
          %s1046 = int_to_ptr.hbm [resolvable:$true] %s1045
          %1048 = dma.vmem_to_hbm [thread:$0]  %s1044, 128, %s1046, %s1030
        $region100: #{tpu_custom_call.1} parent=63 // pred_fallthru
          _
      $region64: #{tpu_custom_call.1} parent=5 // pred_fallthru
        _
      %p1049 = scmp.le.s32.totalorder 2, %s28
      // Predicated region
      $region101: #{tpu_custom_call.1} parent=5 // pred_check
        %p1050 = pneg %p1049
      $region102: #{tpu_custom_call.1} parent=5 // pred_check_branch
        %1052 = sbr.rel (%p1050) target = $region104
      $region103: #{tpu_custom_call.1} parent=5 // pred_region
        %s1053 = ssub.s32 %s28, 2
        // Predicated region
        $region105: #{tpu_custom_call.1} parent=103 // pred_check
          %p1054 = pneg %p319
        $region106: #{tpu_custom_call.1} parent=103 // pred_check_branch
          %1056 = sbr.rel (%p1054) target = $region108
        $region107: #{tpu_custom_call.1} parent=103 // pred_region
          %s1057 = sand.u32 %s304, 1
          %s1058 = scalar_lea.sflag [#allocation7], %s1057
          %s1059 = sand.u32 %s304, 1
          %s1060 = smul.addr %s1059, 8
          %s1061 = scalar_lea.vmem [#allocation17], %s1060
          %1063 = dma.done %s1058, 128
        $region108: #{tpu_custom_call.1} parent=103 // pred_fallthru
          _
      $region104: #{tpu_custom_call.1} parent=5 // pred_fallthru
        _
    $region6: #{tpu_custom_call.1} parent=1 // loop_footer
      %s32 = sadd.s32 1, %s28
    $region7: #{tpu_custom_call.1} parent=1 // loop_footer_branch
      %27 = sbr.rel target = $region3
    $region8: #{tpu_custom_call.1} parent=1 // loop_exit
      _
    %1064 = vsyncpa [#allocation6], 1
    %s1065 = scalar_lea.sflag [#allocation6], 1
    %1066 = vsyncpa %s1065, 1
    %1067 = vsyncpa [#allocation9], 1
    %s1068 = scalar_lea.sflag [#allocation9], 1
    %1069 = vsyncpa %s1068, 1
    %1070 = vsyncpa [#allocation12], 1
    %1071 = vsyncpa [#allocation15], 1
    %1072 = vsyncpa [#allocation7], 1
    %s1073 = scalar_lea.sflag [#allocation7], 1
    %1074 = vsyncpa %s1073, 1

</llo_original>
